<compile_context>
chip_gen: v7x
topology: tpu7x:2x2x1
jax: 0.10.0
libtpu: 0.0.40
codegen_flags: <defaults>
</compile_context>

<pallas_src>
import functools

import jax
import jax.numpy as jnp
from jax.experimental import pallas as pl
from jax.experimental.pallas import tpu as pltpu


def _sigmoid(z):
    # Exact sigmoid (tiny arrays); pl.reciprocal(approx=True) is not needed here
    # and could violate the 1e-4 tolerance.
    return 1.0 / (1.0 + jnp.exp(-z))


def cbam_kernel(x_ref, w1_ref, w2_ref, wsp_ref, o_ref, *, C, H, W, K, b_tile):
    """One grid step processes `b_tile` batch elements.

    x_ref   : (b_tile*C, H*W)     VMEM  (contiguous view of NCHW)
    w1_ref  : (Cr, C)             VMEM  fc1 weight
    w2_ref  : (C, Cr)             VMEM  fc2 weight
    wsp_ref : (K*K, 2*b_tile, 1)  VMEM  per-tap broadcast weight columns,
                                        rows = [w_avg]*b_tile + [w_max]*b_tile
    o_ref   : (b_tile*C, H*W)     VMEM
    """
    HW = H * W
    pad = K // 2
    Bt = b_tile

    x = x_ref[...].astype(jnp.float32)                          # (Bt*C, HW)

    # ---------------- Channel attention ----------------
    c_avg = jnp.mean(x, axis=1, keepdims=True)                  # (Bt*C, 1) lane reduce
    c_max = jnp.max(x, axis=1, keepdims=True)                   # (Bt*C, 1)
    pooled = jnp.concatenate([c_avg, c_max], axis=1)            # (Bt*C, 2)

    # Pack every batch element's [avg | max] columns into one (C, 2*Bt) RHS so
    # each FC layer is a single MXU matmul for the whole tile.
    big_pooled = jnp.concatenate(
        [pooled[b * C:(b + 1) * C, :] for b in range(Bt)], axis=1)      # (C, 2*Bt)

    h = jnp.maximum(
        jnp.dot(w1_ref[...], big_pooled,
                preferred_element_type=jnp.float32), 0.0)               # (Cr, 2*Bt)
    z = jnp.dot(w2_ref[...], h, preferred_element_type=jnp.float32)     # (C, 2*Bt)

    # sigmoid(avg_out + max_out), re-stacked to match the (Bt*C, 1) row layout.
    ca = _sigmoid(jnp.concatenate(
        [z[:, 2 * b:2 * b + 1] + z[:, 2 * b + 1:2 * b + 2] for b in range(Bt)],
        axis=0))                                                        # (Bt*C, 1)

    x1 = x * ca                                                         # (Bt*C, HW)

    # ---------------- Spatial attention ----------------
    # Sublane-packed maps: rows [avg_0 .. avg_{Bt-1}, max_0 .. max_{Bt-1}].
    avg_rows = [jnp.mean(x1[b * C:(b + 1) * C, :], axis=0, keepdims=True)
                for b in range(Bt)]
    max_rows = [jnp.max(x1[b * C:(b + 1) * C, :], axis=0, keepdims=True)
                for b in range(Bt)]
    s_in = jnp.concatenate(avg_rows + max_rows, axis=0)                 # (2*Bt, HW)

    lane = jax.lax.broadcasted_iota(jnp.int32, (1, HW), 1)
    xcoord = lane % W                                                   # column index

    def shift_flat(v, amount):
        # v'[i] = v[(i + amount) mod HW] (circular; wraps are killed by masks).
        sh = (-amount) % HW
        if sh == 0:
            return v
        return pltpu.roll(v, shift=sh, axis=1)

    # Stage 1: K lane-shifted, column-masked copies of the packed maps (XLU rolls).
    cs = []
    for dx in range(K):
        ox = dx - pad
        xmask = jnp.logical_and(xcoord + ox >= 0,
                                xcoord + ox < W).astype(jnp.float32)    # (1, HW)
        cs.append(shift_flat(s_in, ox) * xmask)                         # (2*Bt, HW)

    # Stage 2: per kernel row combine the dx taps with a per-sublane weight column
    # (one vector load + lane broadcast per tap), then one row roll + row mask.
    # Even/odd accumulators keep the FMA dependency chains short.
    acc_even = jnp.zeros_like(s_in)
    acc_odd = jnp.zeros_like(s_in)
    for dy in range(K):
        oy = dy - pad
        p = jnp.zeros_like(s_in)
        for dx in range(K):
            w_col = wsp_ref[dy * K + dx]                                # (2*Bt, 1)
            p = p + w_col * cs[dx]
        ymask = jnp.logical_and(lane + oy * W >= 0,
                                lane + oy * W < HW).astype(jnp.float32)
        contrib = shift_flat(p, oy * W) * ymask
        if dy % 2 == 0:
            acc_even = acc_even + contrib
        else:
            acc_odd = acc_odd + contrib
    acc = acc_even + acc_odd                                            # (2*Bt, HW)

    # Reduce avg/max halves over sublanes, apply, and store lane-dense.
    sa = _sigmoid(acc[0:Bt, :] + acc[Bt:2 * Bt, :])                     # (Bt, HW)
    for b in range(Bt):
        o_ref[pl.ds(b * C, C), :] = (
            x1[b * C:(b + 1) * C, :] * sa[b:b + 1, :]).astype(o_ref.dtype)


def _pick_b_tile(B, C, HW, itemsize):
    """Largest batch tile that (a) divides B, (b) keeps double-buffered in+out
    blocks inside a v7x-sized VMEM budget, and (c) for non-tiny blocks keeps
    >= 2 grid steps so "parallel" can shard across both v7x TensorCores."""
    budget = 16 * 1024 * 1024                 # conservative slice of v7x's 64 MiB
    per_elem = C * HW * itemsize
    divisors = [d for d in range(1, B + 1) if B % d == 0]
    fitting = [d for d in divisors if 4 * d * per_elem <= budget] or [1]
    b_tile = max(fitting)
    if B // b_tile < 2:
        smaller = [d for d in fitting if B // d >= 2]
        # Only give up whole-batch tiling when blocks are big enough that the
        # per-grid-step overhead is no longer the dominant cost.
        if smaller and max(smaller) * per_elem >= (1 << 20):
            b_tile = max(smaller)
    return b_tile


def cbam_pallas(x_nchw, w1, w2, wsp):
    """x_nchw: (B, C, H, W); w1: (Cr, C); w2: (C, Cr); wsp: (2, K, K)."""
    B, C, H, W = x_nchw.shape
    Cr = w1.shape[0]
    K = wsp.shape[-1]
    HW = H * W
    itemsize = jnp.dtype(x_nchw.dtype).itemsize

    b_tile = _pick_b_tile(B, C, HW, itemsize)
    # (8, 128) rule: the block's row dim must be a multiple of 8 unless the block
    # spans the whole array; fall back to whole-batch blocks if violated.
    if (b_tile * C) % 8 != 0 and b_tile != B:
        b_tile = B
    grid_b = B // b_tile

    x_flat = x_nchw.reshape(B * C, HW)                       # free view of NCHW
    # Per-tap broadcast weight columns matching the packed-map row layout:
    # rows [w_avg]*b_tile + [w_max]*b_tile, one (2*b_tile, 1) column per tap.
    wsp_cols = jnp.repeat(wsp.reshape(2, K * K), b_tile, axis=0)   # (2*Bt, K*K)
    wsp_cols = wsp_cols.T.reshape(K * K, 2 * b_tile, 1)

    kernel = functools.partial(cbam_kernel, C=C, H=H, W=W, K=K, b_tile=b_tile)

    block_bytes = b_tile * C * HW * itemsize
    # Double-buffered in + out blocks, f32 temporaries and weights, with margin;
    # a few MiB here instead of the full 64 MiB of a v7x TensorCore.
    vmem_limit = int(min(max(16 * block_bytes + (2 << 20), 8 << 20), 64 << 20))

    out_flat = pl.pallas_call(
        kernel,
        out_shape=jax.ShapeDtypeStruct((B * C, HW), x_flat.dtype),
        grid=(grid_b,),
        in_specs=[
            pl.BlockSpec((b_tile * C, HW), lambda i: (i, 0)),
            pl.BlockSpec((Cr, C), lambda i: (0, 0)),
            pl.BlockSpec((C, Cr), lambda i: (0, 0)),
            pl.BlockSpec((K * K, 2 * b_tile, 1), lambda i: (0, 0, 0)),
        ],
        out_specs=pl.BlockSpec((b_tile * C, HW), lambda i: (i, 0)),
        compiler_params=pltpu.CompilerParams(
            dimension_semantics=("parallel",),      # both v7x TCs when grid_b >= 2
            vmem_limit_bytes=vmem_limit),
    )(x_flat, w1, w2, wsp_cols)

    return out_flat.reshape(B, C, H, W)


def cbam_reference(x_nchw, w1, w2, wsp):
    """Pure-JAX reference matching the PyTorch module semantics (NCHW)."""
    c_avg = jnp.mean(x_nchw, axis=(2, 3))                    # (B, C)
    c_max = jnp.max(x_nchw, axis=(2, 3))                     # (B, C)

    def mlp(v):
        return jnp.maximum(v @ w1.T, 0.0) @ w2.T

    ca = jax.nn.sigmoid(mlp(c_avg) + mlp(c_max))             # (B, C)
    x1 = x_nchw * ca[:, :, None, None]

    s_avg = jnp.mean(x1, axis=1, keepdims=True)
    s_max = jnp.max(x1, axis=1, keepdims=True)
    s_in = jnp.concatenate([s_avg, s_max], axis=1)           # (B, 2, H, W)
    pad = wsp.shape[-1] // 2
    conv = jax.lax.conv_general_dilated(
        s_in, wsp[None], window_strides=(1, 1),
        padding=[(pad, pad), (pad, pad)],
        dimension_numbers=("NCHW", "OIHW", "NCHW"))
    sa = jax.nn.sigmoid(conv)                                # (B, 1, H, W)
    return x1 * sa


if __name__ == "__main__":
    B, C, H, W = 2, 16, 16, 16
    ratio, K = 8, 7
    Cr = C // ratio

    key = jax.random.PRNGKey(0)
    kx, k1, k2, k3 = jax.random.split(key, 4)
    x = jax.random.normal(kx, (B, C, H, W), dtype=jnp.float32)
    w1 = 0.2 * jax.random.normal(k1, (Cr, C), dtype=jnp.float32)     # fc1 (1x1 conv)
    w2 = 0.2 * jax.random.normal(k2, (C, Cr), dtype=jnp.float32)     # fc2 (1x1 conv)
    wsp = 0.1 * jax.random.normal(k3, (2, K, K), dtype=jnp.float32)  # spatial conv

    ref = jax.block_until_ready(cbam_reference(x, w1, w2, wsp))

    cbam = jax.jit(cbam_pallas)
    out = jax.block_until_ready(cbam(x, w1, w2, wsp))

    assert out.shape == (B, C, H, W)
    err = float(jnp.max(jnp.abs(out - ref)))
    assert jnp.allclose(out, ref, atol=1e-4, rtol=1e-4), err

    print("KERNEL_OK")
</pallas_src>

<mosaic_0001>
module attributes {stable_mosaic.version = 11 : i64} {
  func.func @cbam_kernel(%arg0: i32, %arg1: memref<32x256xf32, #tpu.memory_space<vmem>>, %arg2: memref<2x16xf32, #tpu.memory_space<vmem>>, %arg3: memref<16x2xf32, #tpu.memory_space<vmem>>, %arg4: memref<49x4x1xf32, #tpu.memory_space<vmem>>, %arg5: memref<32x256xf32, #tpu.memory_space<vmem>>) attributes {dimension_semantics = [#tpu.dimension_semantics<parallel>], iteration_bounds = array<i64: 1>, scalar_prefetch = 0 : i64, scratch_operands = 0 : i64, tpu.core_type = #tpu.core_type<tc>, window_params = [{transform_indices = @transform_0, window_bounds = array<i64: 32, 256>}, {pipeline_mode = #tpu.pipeline_mode<synchronous>, transform_indices = @transform_1, window_bounds = array<i64: 2, 16>}, {pipeline_mode = #tpu.pipeline_mode<synchronous>, transform_indices = @transform_2, window_bounds = array<i64: 16, 2>}, {pipeline_mode = #tpu.pipeline_mode<synchronous>, transform_indices = @transform_3, window_bounds = array<i64: 49, 4, 1>}, {transform_indices = @transform_4, window_bounds = array<i64: 32, 256>}]} {
    %c0 = arith.constant 0 : index
    %c0_0 = arith.constant 0 : index
    %0 = vector.load %arg1[%c0, %c0_0] : memref<32x256xf32, #tpu.memory_space<vmem>>, vector<32x256xf32>
    %cst = arith.constant dense<0.000000e+00> : vector<32xf32>
    %1 = vector.multi_reduction <add>, %0, %cst [1] : vector<32x256xf32> to vector<32xf32>
    %2 = vector.shape_cast %1 : vector<32xf32> to vector<32x1xf32>
    %cst_1 = arith.constant 2.560000e+02 : f32
    %3 = vector.broadcast %cst_1 : f32 to vector<32x1xf32>
    %4 = arith.divf %2, %3 : vector<32x1xf32>
    %cst_2 = arith.constant dense<0xFF800000> : vector<32xf32>
    %5 = vector.multi_reduction <maximumf>, %0, %cst_2 [1] : vector<32x256xf32> to vector<32xf32>
    %6 = vector.shape_cast %5 : vector<32xf32> to vector<32x1xf32>
    %7 = tpu.concatenate %4, %6 in 1 : vector<32x1xf32>, vector<32x1xf32> -> vector<32x2xf32>
    %8 = vector.extract_strided_slice %7 {offsets = [0, 0], sizes = [16, 2], strides = [1, 1]} : vector<32x2xf32> to vector<16x2xf32>
    %9 = vector.extract_strided_slice %7 {offsets = [16, 0], sizes = [16, 2], strides = [1, 1]} : vector<32x2xf32> to vector<16x2xf32>
    %10 = tpu.concatenate %8, %9 in 1 : vector<16x2xf32>, vector<16x2xf32> -> vector<16x4xf32>
    %c0_3 = arith.constant 0 : index
    %c0_4 = arith.constant 0 : index
    %11 = vector.load %arg2[%c0_3, %c0_4] : memref<2x16xf32, #tpu.memory_space<vmem>>, vector<2x16xf32>
    %cst_5 = arith.constant dense<0.000000e+00> : vector<2x4xf32>
    %12 = tpu.matmul %11, %10, %cst_5 {dimension_numbers = #tpu.dot_dimension_numbers<[1], [0], [0], [1], [0, 0, 1, 1], [], []>} : vector<2x16xf32>, vector<16x4xf32>, vector<2x4xf32> -> vector<2x4xf32>
    %cst_6 = arith.constant 0.000000e+00 : f32
    %13 = vector.broadcast %cst_6 : f32 to vector<2x4xf32>
    %14 = arith.maximumf %12, %13 : vector<2x4xf32>
    %c0_7 = arith.constant 0 : index
    %c0_8 = arith.constant 0 : index
    %15 = vector.load %arg3[%c0_7, %c0_8] : memref<16x2xf32, #tpu.memory_space<vmem>>, vector<16x2xf32>
    %cst_9 = arith.constant dense<0.000000e+00> : vector<16x4xf32>
    %16 = tpu.matmul %15, %14, %cst_9 {dimension_numbers = #tpu.dot_dimension_numbers<[1], [0], [0], [1], [0, 0, 1, 1], [], []>} : vector<16x2xf32>, vector<2x4xf32>, vector<16x4xf32> -> vector<16x4xf32>
    %17 = vector.extract_strided_slice %16 {offsets = [0, 0], sizes = [16, 1], strides = [1, 1]} : vector<16x4xf32> to vector<16x1xf32>
    %18 = vector.extract_strided_slice %16 {offsets = [0, 1], sizes = [16, 1], strides = [1, 1]} : vector<16x4xf32> to vector<16x1xf32>
    %19 = arith.addf %17, %18 : vector<16x1xf32>
    %20 = vector.extract_strided_slice %16 {offsets = [0, 2], sizes = [16, 1], strides = [1, 1]} : vector<16x4xf32> to vector<16x1xf32>
    %21 = vector.extract_strided_slice %16 {offsets = [0, 3], sizes = [16, 1], strides = [1, 1]} : vector<16x4xf32> to vector<16x1xf32>
    %22 = arith.addf %20, %21 : vector<16x1xf32>
    %23 = tpu.concatenate %19, %22 in 0 : vector<16x1xf32>, vector<16x1xf32> -> vector<32x1xf32>
    %cst_10 = arith.constant 0.000000e+00 : f32
    %24 = vector.broadcast %cst_10 : f32 to vector<32x1xf32>
    %25 = arith.subf %24, %23 : vector<32x1xf32>
    %26 = math.exp %25 : vector<32x1xf32>
    %cst_11 = arith.constant 1.000000e+00 : f32
    %27 = vector.broadcast %cst_11 : f32 to vector<32x1xf32>
    %28 = arith.addf %27, %26 : vector<32x1xf32>
    %cst_12 = arith.constant 1.000000e+00 : f32
    %29 = vector.broadcast %cst_12 : f32 to vector<32x1xf32>
    %30 = arith.divf %29, %28 : vector<32x1xf32>
    %31 = vector.broadcast %30 : vector<32x1xf32> to vector<32x256xf32>
    %32 = arith.mulf %0, %31 : vector<32x256xf32>
    %33 = vector.extract_strided_slice %32 {offsets = [0, 0], sizes = [16, 256], strides = [1, 1]} : vector<32x256xf32> to vector<16x256xf32>
    %cst_13 = arith.constant dense<0.000000e+00> : vector<256xf32>
    %34 = vector.multi_reduction <add>, %33, %cst_13 [0] : vector<16x256xf32> to vector<256xf32>
    %35 = vector.shape_cast %34 : vector<256xf32> to vector<1x256xf32>
    %cst_14 = arith.constant 1.600000e+01 : f32
    %36 = vector.broadcast %cst_14 : f32 to vector<1x256xf32>
    %37 = arith.divf %35, %36 : vector<1x256xf32>
    %38 = vector.extract_strided_slice %32 {offsets = [16, 0], sizes = [16, 256], strides = [1, 1]} : vector<32x256xf32> to vector<16x256xf32>
    %cst_15 = arith.constant dense<0.000000e+00> : vector<256xf32>
    %39 = vector.multi_reduction <add>, %38, %cst_15 [0] : vector<16x256xf32> to vector<256xf32>
    %40 = vector.shape_cast %39 : vector<256xf32> to vector<1x256xf32>
    %cst_16 = arith.constant 1.600000e+01 : f32
    %41 = vector.broadcast %cst_16 : f32 to vector<1x256xf32>
    %42 = arith.divf %40, %41 : vector<1x256xf32>
    %43 = vector.extract_strided_slice %32 {offsets = [0, 0], sizes = [16, 256], strides = [1, 1]} : vector<32x256xf32> to vector<16x256xf32>
    %cst_17 = arith.constant dense<0xFF800000> : vector<256xf32>
    %44 = vector.multi_reduction <maximumf>, %43, %cst_17 [0] : vector<16x256xf32> to vector<256xf32>
    %45 = vector.shape_cast %44 : vector<256xf32> to vector<1x256xf32>
    %46 = vector.extract_strided_slice %32 {offsets = [16, 0], sizes = [16, 256], strides = [1, 1]} : vector<32x256xf32> to vector<16x256xf32>
    %cst_18 = arith.constant dense<0xFF800000> : vector<256xf32>
    %47 = vector.multi_reduction <maximumf>, %46, %cst_18 [0] : vector<16x256xf32> to vector<256xf32>
    %48 = vector.shape_cast %47 : vector<256xf32> to vector<1x256xf32>
    %49 = tpu.concatenate %37, %42, %45, %48 in 0 : vector<1x256xf32>, vector<1x256xf32>, vector<1x256xf32>, vector<1x256xf32> -> vector<4x256xf32>
    %50 = tpu.iota {dimensions = array<i32: 1>} : vector<1x256xi32>
    %c16_i32 = arith.constant 16 : i32
    %c0_i32 = arith.constant 0 : i32
    %51 = arith.cmpi eq, %c16_i32, %c0_i32 : i32
    %c1_i32 = arith.constant 1 : i32
    %52 = arith.select %51, %c1_i32, %c16_i32 : i32
    %53 = vector.broadcast %52 : i32 to vector<1x256xi32>
    %54 = arith.remsi %50, %53 : vector<1x256xi32>
    %c0_i32_19 = arith.constant 0 : i32
    %55 = vector.broadcast %c0_i32_19 : i32 to vector<1x256xi32>
    %56 = arith.cmpi ne, %54, %55 : vector<1x256xi32>
    %c0_i32_20 = arith.constant 0 : i32
    %57 = vector.broadcast %c0_i32_20 : i32 to vector<1x256xi32>
    %58 = arith.cmpi slt, %54, %57 : vector<1x256xi32>
    %c0_i32_21 = arith.constant 0 : i32
    %59 = arith.cmpi slt, %52, %c0_i32_21 : i32
    %60 = vector.broadcast %59 : i1 to vector<1x256xi1>
    %61 = vector.broadcast %60 : vector<1x256xi1> to vector<1x256xi1>
    %62 = arith.xori %58, %61 : vector<1x256xi1>
    %63 = arith.andi %62, %56 : vector<1x256xi1>
    %64 = vector.broadcast %52 : i32 to vector<1x256xi32>
    %65 = arith.addi %54, %64 : vector<1x256xi32>
    %66 = arith.select %63, %65, %54 : vector<1x256xi1>, vector<1x256xi32>
    %c-3_i32 = arith.constant -3 : i32
    %67 = vector.broadcast %c-3_i32 : i32 to vector<1x256xi32>
    %68 = arith.addi %66, %67 : vector<1x256xi32>
    %c0_i32_22 = arith.constant 0 : i32
    %69 = vector.broadcast %c0_i32_22 : i32 to vector<1x256xi32>
    %70 = arith.cmpi sge, %68, %69 : vector<1x256xi32>
    %c-3_i32_23 = arith.constant -3 : i32
    %71 = vector.broadcast %c-3_i32_23 : i32 to vector<1x256xi32>
    %72 = arith.addi %66, %71 : vector<1x256xi32>
    %c16_i32_24 = arith.constant 16 : i32
    %73 = vector.broadcast %c16_i32_24 : i32 to vector<1x256xi32>
    %74 = arith.cmpi slt, %72, %73 : vector<1x256xi32>
    %75 = arith.andi %70, %74 : vector<1x256xi1>
    %76 = arith.extui %75 : vector<1x256xi1> to vector<1x256xi32>
    %77 = arith.sitofp %76 : vector<1x256xi32> to vector<1x256xf32>
    %c3_i32 = arith.constant 3 : i32
    %78 = tpu.dynamic_rotate %49 by %c3_i32 dim 1 : vector<4x256xf32>, i32 -> vector<4x256xf32>
    %79 = vector.broadcast %77 : vector<1x256xf32> to vector<4x256xf32>
    %80 = arith.mulf %78, %79 : vector<4x256xf32>
    %c-2_i32 = arith.constant -2 : i32
    %81 = vector.broadcast %c-2_i32 : i32 to vector<1x256xi32>
    %82 = arith.addi %66, %81 : vector<1x256xi32>
    %c0_i32_25 = arith.constant 0 : i32
    %83 = vector.broadcast %c0_i32_25 : i32 to vector<1x256xi32>
    %84 = arith.cmpi sge, %82, %83 : vector<1x256xi32>
    %c-2_i32_26 = arith.constant -2 : i32
    %85 = vector.broadcast %c-2_i32_26 : i32 to vector<1x256xi32>
    %86 = arith.addi %66, %85 : vector<1x256xi32>
    %c16_i32_27 = arith.constant 16 : i32
    %87 = vector.broadcast %c16_i32_27 : i32 to vector<1x256xi32>
    %88 = arith.cmpi slt, %86, %87 : vector<1x256xi32>
    %89 = arith.andi %84, %88 : vector<1x256xi1>
    %90 = arith.extui %89 : vector<1x256xi1> to vector<1x256xi32>
    %91 = arith.sitofp %90 : vector<1x256xi32> to vector<1x256xf32>
    %c2_i32 = arith.constant 2 : i32
    %92 = tpu.dynamic_rotate %49 by %c2_i32 dim 1 : vector<4x256xf32>, i32 -> vector<4x256xf32>
    %93 = vector.broadcast %91 : vector<1x256xf32> to vector<4x256xf32>
    %94 = arith.mulf %92, %93 : vector<4x256xf32>
    %c-1_i32 = arith.constant -1 : i32
    %95 = vector.broadcast %c-1_i32 : i32 to vector<1x256xi32>
    %96 = arith.addi %66, %95 : vector<1x256xi32>
    %c0_i32_28 = arith.constant 0 : i32
    %97 = vector.broadcast %c0_i32_28 : i32 to vector<1x256xi32>
    %98 = arith.cmpi sge, %96, %97 : vector<1x256xi32>
    %c-1_i32_29 = arith.constant -1 : i32
    %99 = vector.broadcast %c-1_i32_29 : i32 to vector<1x256xi32>
    %100 = arith.addi %66, %99 : vector<1x256xi32>
    %c16_i32_30 = arith.constant 16 : i32
    %101 = vector.broadcast %c16_i32_30 : i32 to vector<1x256xi32>
    %102 = arith.cmpi slt, %100, %101 : vector<1x256xi32>
    %103 = arith.andi %98, %102 : vector<1x256xi1>
    %104 = arith.extui %103 : vector<1x256xi1> to vector<1x256xi32>
    %105 = arith.sitofp %104 : vector<1x256xi32> to vector<1x256xf32>
    %c1_i32_31 = arith.constant 1 : i32
    %106 = tpu.dynamic_rotate %49 by %c1_i32_31 dim 1 : vector<4x256xf32>, i32 -> vector<4x256xf32>
    %107 = vector.broadcast %105 : vector<1x256xf32> to vector<4x256xf32>
    %108 = arith.mulf %106, %107 : vector<4x256xf32>
    %c0_i32_32 = arith.constant 0 : i32
    %109 = vector.broadcast %c0_i32_32 : i32 to vector<1x256xi32>
    %110 = arith.addi %66, %109 : vector<1x256xi32>
    %c0_i32_33 = arith.constant 0 : i32
    %111 = vector.broadcast %c0_i32_33 : i32 to vector<1x256xi32>
    %112 = arith.cmpi sge, %110, %111 : vector<1x256xi32>
    %c0_i32_34 = arith.constant 0 : i32
    %113 = vector.broadcast %c0_i32_34 : i32 to vector<1x256xi32>
    %114 = arith.addi %66, %113 : vector<1x256xi32>
    %c16_i32_35 = arith.constant 16 : i32
    %115 = vector.broadcast %c16_i32_35 : i32 to vector<1x256xi32>
    %116 = arith.cmpi slt, %114, %115 : vector<1x256xi32>
    %117 = arith.andi %112, %116 : vector<1x256xi1>
    %118 = arith.extui %117 : vector<1x256xi1> to vector<1x256xi32>
    %119 = arith.sitofp %118 : vector<1x256xi32> to vector<1x256xf32>
    %120 = vector.broadcast %119 : vector<1x256xf32> to vector<4x256xf32>
    %121 = arith.mulf %49, %120 : vector<4x256xf32>
    %c1_i32_36 = arith.constant 1 : i32
    %122 = vector.broadcast %c1_i32_36 : i32 to vector<1x256xi32>
    %123 = arith.addi %66, %122 : vector<1x256xi32>
    %c0_i32_37 = arith.constant 0 : i32
    %124 = vector.broadcast %c0_i32_37 : i32 to vector<1x256xi32>
    %125 = arith.cmpi sge, %123, %124 : vector<1x256xi32>
    %c1_i32_38 = arith.constant 1 : i32
    %126 = vector.broadcast %c1_i32_38 : i32 to vector<1x256xi32>
    %127 = arith.addi %66, %126 : vector<1x256xi32>
    %c16_i32_39 = arith.constant 16 : i32
    %128 = vector.broadcast %c16_i32_39 : i32 to vector<1x256xi32>
    %129 = arith.cmpi slt, %127, %128 : vector<1x256xi32>
    %130 = arith.andi %125, %129 : vector<1x256xi1>
    %131 = arith.extui %130 : vector<1x256xi1> to vector<1x256xi32>
    %132 = arith.sitofp %131 : vector<1x256xi32> to vector<1x256xf32>
    %c255_i32 = arith.constant 255 : i32
    %133 = tpu.dynamic_rotate %49 by %c255_i32 dim 1 : vector<4x256xf32>, i32 -> vector<4x256xf32>
    %134 = vector.broadcast %132 : vector<1x256xf32> to vector<4x256xf32>
    %135 = arith.mulf %133, %134 : vector<4x256xf32>
    %c2_i32_40 = arith.constant 2 : i32
    %136 = vector.broadcast %c2_i32_40 : i32 to vector<1x256xi32>
    %137 = arith.addi %66, %136 : vector<1x256xi32>
    %c0_i32_41 = arith.constant 0 : i32
    %138 = vector.broadcast %c0_i32_41 : i32 to vector<1x256xi32>
    %139 = arith.cmpi sge, %137, %138 : vector<1x256xi32>
    %c2_i32_42 = arith.constant 2 : i32
    %140 = vector.broadcast %c2_i32_42 : i32 to vector<1x256xi32>
    %141 = arith.addi %66, %140 : vector<1x256xi32>
    %c16_i32_43 = arith.constant 16 : i32
    %142 = vector.broadcast %c16_i32_43 : i32 to vector<1x256xi32>
    %143 = arith.cmpi slt, %141, %142 : vector<1x256xi32>
    %144 = arith.andi %139, %143 : vector<1x256xi1>
    %145 = arith.extui %144 : vector<1x256xi1> to vector<1x256xi32>
    %146 = arith.sitofp %145 : vector<1x256xi32> to vector<1x256xf32>
    %c254_i32 = arith.constant 254 : i32
    %147 = tpu.dynamic_rotate %49 by %c254_i32 dim 1 : vector<4x256xf32>, i32 -> vector<4x256xf32>
    %148 = vector.broadcast %146 : vector<1x256xf32> to vector<4x256xf32>
    %149 = arith.mulf %147, %148 : vector<4x256xf32>
    %c3_i32_44 = arith.constant 3 : i32
    %150 = vector.broadcast %c3_i32_44 : i32 to vector<1x256xi32>
    %151 = arith.addi %66, %150 : vector<1x256xi32>
    %c0_i32_45 = arith.constant 0 : i32
    %152 = vector.broadcast %c0_i32_45 : i32 to vector<1x256xi32>
    %153 = arith.cmpi sge, %151, %152 : vector<1x256xi32>
    %c3_i32_46 = arith.constant 3 : i32
    %154 = vector.broadcast %c3_i32_46 : i32 to vector<1x256xi32>
    %155 = arith.addi %66, %154 : vector<1x256xi32>
    %c16_i32_47 = arith.constant 16 : i32
    %156 = vector.broadcast %c16_i32_47 : i32 to vector<1x256xi32>
    %157 = arith.cmpi slt, %155, %156 : vector<1x256xi32>
    %158 = arith.andi %153, %157 : vector<1x256xi1>
    %159 = arith.extui %158 : vector<1x256xi1> to vector<1x256xi32>
    %160 = arith.sitofp %159 : vector<1x256xi32> to vector<1x256xf32>
    %c253_i32 = arith.constant 253 : i32
    %161 = tpu.dynamic_rotate %49 by %c253_i32 dim 1 : vector<4x256xf32>, i32 -> vector<4x256xf32>
    %162 = vector.broadcast %160 : vector<1x256xf32> to vector<4x256xf32>
    %163 = arith.mulf %161, %162 : vector<4x256xf32>
    %cst_48 = arith.constant 0.000000e+00 : f32
    %164 = vector.broadcast %cst_48 : f32 to vector<4x256xf32>
    %cst_49 = arith.constant 0.000000e+00 : f32
    %165 = vector.broadcast %cst_49 : f32 to vector<4x256xf32>
    %cst_50 = arith.constant 0.000000e+00 : f32
    %166 = vector.broadcast %cst_50 : f32 to vector<4x256xf32>
    %c0_51 = arith.constant 0 : index
    %c0_52 = arith.constant 0 : index
    %c0_53 = arith.constant 0 : index
    %167 = vector.load %arg4[%c0_51, %c0_52, %c0_53] : memref<49x4x1xf32, #tpu.memory_space<vmem>>, vector<1x4x1xf32>
    %168 = vector.shape_cast %167 : vector<1x4x1xf32> to vector<4x1xf32>
    %169 = vector.broadcast %168 : vector<4x1xf32> to vector<4x256xf32>
    %170 = arith.mulf %169, %80 : vector<4x256xf32>
    %171 = arith.addf %166, %170 : vector<4x256xf32>
    %c1 = arith.constant 1 : index
    %c0_54 = arith.constant 0 : index
    %c0_55 = arith.constant 0 : index
    %172 = vector.load %arg4[%c1, %c0_54, %c0_55] : memref<49x4x1xf32, #tpu.memory_space<vmem>>, vector<1x4x1xf32>
    %173 = vector.shape_cast %172 : vector<1x4x1xf32> to vector<4x1xf32>
    %174 = vector.broadcast %173 : vector<4x1xf32> to vector<4x256xf32>
    %175 = arith.mulf %174, %94 : vector<4x256xf32>
    %176 = arith.addf %171, %175 : vector<4x256xf32>
    %c2 = arith.constant 2 : index
    %c0_56 = arith.constant 0 : index
    %c0_57 = arith.constant 0 : index
    %177 = vector.load %arg4[%c2, %c0_56, %c0_57] : memref<49x4x1xf32, #tpu.memory_space<vmem>>, vector<1x4x1xf32>
    %178 = vector.shape_cast %177 : vector<1x4x1xf32> to vector<4x1xf32>
    %179 = vector.broadcast %178 : vector<4x1xf32> to vector<4x256xf32>
    %180 = arith.mulf %179, %108 : vector<4x256xf32>
    %181 = arith.addf %176, %180 : vector<4x256xf32>
    %c3 = arith.constant 3 : index
    %c0_58 = arith.constant 0 : index
    %c0_59 = arith.constant 0 : index
    %182 = vector.load %arg4[%c3, %c0_58, %c0_59] : memref<49x4x1xf32, #tpu.memory_space<vmem>>, vector<1x4x1xf32>
    %183 = vector.shape_cast %182 : vector<1x4x1xf32> to vector<4x1xf32>
    %184 = vector.broadcast %183 : vector<4x1xf32> to vector<4x256xf32>
    %185 = arith.mulf %184, %121 : vector<4x256xf32>
    %186 = arith.addf %181, %185 : vector<4x256xf32>
    %c4 = arith.constant 4 : index
    %c0_60 = arith.constant 0 : index
    %c0_61 = arith.constant 0 : index
    %187 = vector.load %arg4[%c4, %c0_60, %c0_61] : memref<49x4x1xf32, #tpu.memory_space<vmem>>, vector<1x4x1xf32>
    %188 = vector.shape_cast %187 : vector<1x4x1xf32> to vector<4x1xf32>
    %189 = vector.broadcast %188 : vector<4x1xf32> to vector<4x256xf32>
    %190 = arith.mulf %189, %135 : vector<4x256xf32>
    %191 = arith.addf %186, %190 : vector<4x256xf32>
    %c5 = arith.constant 5 : index
    %c0_62 = arith.constant 0 : index
    %c0_63 = arith.constant 0 : index
    %192 = vector.load %arg4[%c5, %c0_62, %c0_63] : memref<49x4x1xf32, #tpu.memory_space<vmem>>, vector<1x4x1xf32>
    %193 = vector.shape_cast %192 : vector<1x4x1xf32> to vector<4x1xf32>
    %194 = vector.broadcast %193 : vector<4x1xf32> to vector<4x256xf32>
    %195 = arith.mulf %194, %149 : vector<4x256xf32>
    %196 = arith.addf %191, %195 : vector<4x256xf32>
    %c6 = arith.constant 6 : index
    %c0_64 = arith.constant 0 : index
    %c0_65 = arith.constant 0 : index
    %197 = vector.load %arg4[%c6, %c0_64, %c0_65] : memref<49x4x1xf32, #tpu.memory_space<vmem>>, vector<1x4x1xf32>
    %198 = vector.shape_cast %197 : vector<1x4x1xf32> to vector<4x1xf32>
    %199 = vector.broadcast %198 : vector<4x1xf32> to vector<4x256xf32>
    %200 = arith.mulf %199, %163 : vector<4x256xf32>
    %201 = arith.addf %196, %200 : vector<4x256xf32>
    %c-48_i32 = arith.constant -48 : i32
    %202 = vector.broadcast %c-48_i32 : i32 to vector<1x256xi32>
    %203 = arith.addi %50, %202 : vector<1x256xi32>
    %c0_i32_66 = arith.constant 0 : i32
    %204 = vector.broadcast %c0_i32_66 : i32 to vector<1x256xi32>
    %205 = arith.cmpi sge, %203, %204 : vector<1x256xi32>
    %c-48_i32_67 = arith.constant -48 : i32
    %206 = vector.broadcast %c-48_i32_67 : i32 to vector<1x256xi32>
    %207 = arith.addi %50, %206 : vector<1x256xi32>
    %c256_i32 = arith.constant 256 : i32
    %208 = vector.broadcast %c256_i32 : i32 to vector<1x256xi32>
    %209 = arith.cmpi slt, %207, %208 : vector<1x256xi32>
    %210 = arith.andi %205, %209 : vector<1x256xi1>
    %211 = arith.extui %210 : vector<1x256xi1> to vector<1x256xi32>
    %212 = arith.sitofp %211 : vector<1x256xi32> to vector<1x256xf32>
    %c48_i32 = arith.constant 48 : i32
    %213 = tpu.dynamic_rotate %201 by %c48_i32 dim 1 : vector<4x256xf32>, i32 -> vector<4x256xf32>
    %214 = vector.broadcast %212 : vector<1x256xf32> to vector<4x256xf32>
    %215 = arith.mulf %213, %214 : vector<4x256xf32>
    %216 = arith.addf %164, %215 : vector<4x256xf32>
    %cst_68 = arith.constant 0.000000e+00 : f32
    %217 = vector.broadcast %cst_68 : f32 to vector<4x256xf32>
    %c7 = arith.constant 7 : index
    %c0_69 = arith.constant 0 : index
    %c0_70 = arith.constant 0 : index
    %218 = vector.load %arg4[%c7, %c0_69, %c0_70] : memref<49x4x1xf32, #tpu.memory_space<vmem>>, vector<1x4x1xf32>
    %219 = vector.shape_cast %218 : vector<1x4x1xf32> to vector<4x1xf32>
    %220 = vector.broadcast %219 : vector<4x1xf32> to vector<4x256xf32>
    %221 = arith.mulf %220, %80 : vector<4x256xf32>
    %222 = arith.addf %217, %221 : vector<4x256xf32>
    %c8 = arith.constant 8 : index
    %c0_71 = arith.constant 0 : index
    %c0_72 = arith.constant 0 : index
    %223 = vector.load %arg4[%c8, %c0_71, %c0_72] : memref<49x4x1xf32, #tpu.memory_space<vmem>>, vector<1x4x1xf32>
    %224 = vector.shape_cast %223 : vector<1x4x1xf32> to vector<4x1xf32>
    %225 = vector.broadcast %224 : vector<4x1xf32> to vector<4x256xf32>
    %226 = arith.mulf %225, %94 : vector<4x256xf32>
    %227 = arith.addf %222, %226 : vector<4x256xf32>
    %c9 = arith.constant 9 : index
    %c0_73 = arith.constant 0 : index
    %c0_74 = arith.constant 0 : index
    %228 = vector.load %arg4[%c9, %c0_73, %c0_74] : memref<49x4x1xf32, #tpu.memory_space<vmem>>, vector<1x4x1xf32>
    %229 = vector.shape_cast %228 : vector<1x4x1xf32> to vector<4x1xf32>
    %230 = vector.broadcast %229 : vector<4x1xf32> to vector<4x256xf32>
    %231 = arith.mulf %230, %108 : vector<4x256xf32>
    %232 = arith.addf %227, %231 : vector<4x256xf32>
    %c10 = arith.constant 10 : index
    %c0_75 = arith.constant 0 : index
    %c0_76 = arith.constant 0 : index
    %233 = vector.load %arg4[%c10, %c0_75, %c0_76] : memref<49x4x1xf32, #tpu.memory_space<vmem>>, vector<1x4x1xf32>
    %234 = vector.shape_cast %233 : vector<1x4x1xf32> to vector<4x1xf32>
    %235 = vector.broadcast %234 : vector<4x1xf32> to vector<4x256xf32>
    %236 = arith.mulf %235, %121 : vector<4x256xf32>
    %237 = arith.addf %232, %236 : vector<4x256xf32>
    %c11 = arith.constant 11 : index
    %c0_77 = arith.constant 0 : index
    %c0_78 = arith.constant 0 : index
    %238 = vector.load %arg4[%c11, %c0_77, %c0_78] : memref<49x4x1xf32, #tpu.memory_space<vmem>>, vector<1x4x1xf32>
    %239 = vector.shape_cast %238 : vector<1x4x1xf32> to vector<4x1xf32>
    %240 = vector.broadcast %239 : vector<4x1xf32> to vector<4x256xf32>
    %241 = arith.mulf %240, %135 : vector<4x256xf32>
    %242 = arith.addf %237, %241 : vector<4x256xf32>
    %c12 = arith.constant 12 : index
    %c0_79 = arith.constant 0 : index
    %c0_80 = arith.constant 0 : index
    %243 = vector.load %arg4[%c12, %c0_79, %c0_80] : memref<49x4x1xf32, #tpu.memory_space<vmem>>, vector<1x4x1xf32>
    %244 = vector.shape_cast %243 : vector<1x4x1xf32> to vector<4x1xf32>
    %245 = vector.broadcast %244 : vector<4x1xf32> to vector<4x256xf32>
    %246 = arith.mulf %245, %149 : vector<4x256xf32>
    %247 = arith.addf %242, %246 : vector<4x256xf32>
    %c13 = arith.constant 13 : index
    %c0_81 = arith.constant 0 : index
    %c0_82 = arith.constant 0 : index
    %248 = vector.load %arg4[%c13, %c0_81, %c0_82] : memref<49x4x1xf32, #tpu.memory_space<vmem>>, vector<1x4x1xf32>
    %249 = vector.shape_cast %248 : vector<1x4x1xf32> to vector<4x1xf32>
    %250 = vector.broadcast %249 : vector<4x1xf32> to vector<4x256xf32>
    %251 = arith.mulf %250, %163 : vector<4x256xf32>
    %252 = arith.addf %247, %251 : vector<4x256xf32>
    %c-32_i32 = arith.constant -32 : i32
    %253 = vector.broadcast %c-32_i32 : i32 to vector<1x256xi32>
    %254 = arith.addi %50, %253 : vector<1x256xi32>
    %c0_i32_83 = arith.constant 0 : i32
    %255 = vector.broadcast %c0_i32_83 : i32 to vector<1x256xi32>
    %256 = arith.cmpi sge, %254, %255 : vector<1x256xi32>
    %c-32_i32_84 = arith.constant -32 : i32
    %257 = vector.broadcast %c-32_i32_84 : i32 to vector<1x256xi32>
    %258 = arith.addi %50, %257 : vector<1x256xi32>
    %c256_i32_85 = arith.constant 256 : i32
    %259 = vector.broadcast %c256_i32_85 : i32 to vector<1x256xi32>
    %260 = arith.cmpi slt, %258, %259 : vector<1x256xi32>
    %261 = arith.andi %256, %260 : vector<1x256xi1>
    %262 = arith.extui %261 : vector<1x256xi1> to vector<1x256xi32>
    %263 = arith.sitofp %262 : vector<1x256xi32> to vector<1x256xf32>
    %c32_i32 = arith.constant 32 : i32
    %264 = tpu.dynamic_rotate %252 by %c32_i32 dim 1 : vector<4x256xf32>, i32 -> vector<4x256xf32>
    %265 = vector.broadcast %263 : vector<1x256xf32> to vector<4x256xf32>
    %266 = arith.mulf %264, %265 : vector<4x256xf32>
    %267 = arith.addf %165, %266 : vector<4x256xf32>
    %cst_86 = arith.constant 0.000000e+00 : f32
    %268 = vector.broadcast %cst_86 : f32 to vector<4x256xf32>
    %c14 = arith.constant 14 : index
    %c0_87 = arith.constant 0 : index
    %c0_88 = arith.constant 0 : index
    %269 = vector.load %arg4[%c14, %c0_87, %c0_88] : memref<49x4x1xf32, #tpu.memory_space<vmem>>, vector<1x4x1xf32>
    %270 = vector.shape_cast %269 : vector<1x4x1xf32> to vector<4x1xf32>
    %271 = vector.broadcast %270 : vector<4x1xf32> to vector<4x256xf32>
    %272 = arith.mulf %271, %80 : vector<4x256xf32>
    %273 = arith.addf %268, %272 : vector<4x256xf32>
    %c15 = arith.constant 15 : index
    %c0_89 = arith.constant 0 : index
    %c0_90 = arith.constant 0 : index
    %274 = vector.load %arg4[%c15, %c0_89, %c0_90] : memref<49x4x1xf32, #tpu.memory_space<vmem>>, vector<1x4x1xf32>
    %275 = vector.shape_cast %274 : vector<1x4x1xf32> to vector<4x1xf32>
    %276 = vector.broadcast %275 : vector<4x1xf32> to vector<4x256xf32>
    %277 = arith.mulf %276, %94 : vector<4x256xf32>
    %278 = arith.addf %273, %277 : vector<4x256xf32>
    %c16 = arith.constant 16 : index
    %c0_91 = arith.constant 0 : index
    %c0_92 = arith.constant 0 : index
    %279 = vector.load %arg4[%c16, %c0_91, %c0_92] : memref<49x4x1xf32, #tpu.memory_space<vmem>>, vector<1x4x1xf32>
    %280 = vector.shape_cast %279 : vector<1x4x1xf32> to vector<4x1xf32>
    %281 = vector.broadcast %280 : vector<4x1xf32> to vector<4x256xf32>
    %282 = arith.mulf %281, %108 : vector<4x256xf32>
    %283 = arith.addf %278, %282 : vector<4x256xf32>
    %c17 = arith.constant 17 : index
    %c0_93 = arith.constant 0 : index
    %c0_94 = arith.constant 0 : index
    %284 = vector.load %arg4[%c17, %c0_93, %c0_94] : memref<49x4x1xf32, #tpu.memory_space<vmem>>, vector<1x4x1xf32>
    %285 = vector.shape_cast %284 : vector<1x4x1xf32> to vector<4x1xf32>
    %286 = vector.broadcast %285 : vector<4x1xf32> to vector<4x256xf32>
    %287 = arith.mulf %286, %121 : vector<4x256xf32>
    %288 = arith.addf %283, %287 : vector<4x256xf32>
    %c18 = arith.constant 18 : index
    %c0_95 = arith.constant 0 : index
    %c0_96 = arith.constant 0 : index
    %289 = vector.load %arg4[%c18, %c0_95, %c0_96] : memref<49x4x1xf32, #tpu.memory_space<vmem>>, vector<1x4x1xf32>
    %290 = vector.shape_cast %289 : vector<1x4x1xf32> to vector<4x1xf32>
    %291 = vector.broadcast %290 : vector<4x1xf32> to vector<4x256xf32>
    %292 = arith.mulf %291, %135 : vector<4x256xf32>
    %293 = arith.addf %288, %292 : vector<4x256xf32>
    %c19 = arith.constant 19 : index
    %c0_97 = arith.constant 0 : index
    %c0_98 = arith.constant 0 : index
    %294 = vector.load %arg4[%c19, %c0_97, %c0_98] : memref<49x4x1xf32, #tpu.memory_space<vmem>>, vector<1x4x1xf32>
    %295 = vector.shape_cast %294 : vector<1x4x1xf32> to vector<4x1xf32>
    %296 = vector.broadcast %295 : vector<4x1xf32> to vector<4x256xf32>
    %297 = arith.mulf %296, %149 : vector<4x256xf32>
    %298 = arith.addf %293, %297 : vector<4x256xf32>
    %c20 = arith.constant 20 : index
    %c0_99 = arith.constant 0 : index
    %c0_100 = arith.constant 0 : index
    %299 = vector.load %arg4[%c20, %c0_99, %c0_100] : memref<49x4x1xf32, #tpu.memory_space<vmem>>, vector<1x4x1xf32>
    %300 = vector.shape_cast %299 : vector<1x4x1xf32> to vector<4x1xf32>
    %301 = vector.broadcast %300 : vector<4x1xf32> to vector<4x256xf32>
    %302 = arith.mulf %301, %163 : vector<4x256xf32>
    %303 = arith.addf %298, %302 : vector<4x256xf32>
    %c-16_i32 = arith.constant -16 : i32
    %304 = vector.broadcast %c-16_i32 : i32 to vector<1x256xi32>
    %305 = arith.addi %50, %304 : vector<1x256xi32>
    %c0_i32_101 = arith.constant 0 : i32
    %306 = vector.broadcast %c0_i32_101 : i32 to vector<1x256xi32>
    %307 = arith.cmpi sge, %305, %306 : vector<1x256xi32>
    %c-16_i32_102 = arith.constant -16 : i32
    %308 = vector.broadcast %c-16_i32_102 : i32 to vector<1x256xi32>
    %309 = arith.addi %50, %308 : vector<1x256xi32>
    %c256_i32_103 = arith.constant 256 : i32
    %310 = vector.broadcast %c256_i32_103 : i32 to vector<1x256xi32>
    %311 = arith.cmpi slt, %309, %310 : vector<1x256xi32>
    %312 = arith.andi %307, %311 : vector<1x256xi1>
    %313 = arith.extui %312 : vector<1x256xi1> to vector<1x256xi32>
    %314 = arith.sitofp %313 : vector<1x256xi32> to vector<1x256xf32>
    %c16_i32_104 = arith.constant 16 : i32
    %315 = tpu.dynamic_rotate %303 by %c16_i32_104 dim 1 : vector<4x256xf32>, i32 -> vector<4x256xf32>
    %316 = vector.broadcast %314 : vector<1x256xf32> to vector<4x256xf32>
    %317 = arith.mulf %315, %316 : vector<4x256xf32>
    %318 = arith.addf %216, %317 : vector<4x256xf32>
    %cst_105 = arith.constant 0.000000e+00 : f32
    %319 = vector.broadcast %cst_105 : f32 to vector<4x256xf32>
    %c21 = arith.constant 21 : index
    %c0_106 = arith.constant 0 : index
    %c0_107 = arith.constant 0 : index
    %320 = vector.load %arg4[%c21, %c0_106, %c0_107] : memref<49x4x1xf32, #tpu.memory_space<vmem>>, vector<1x4x1xf32>
    %321 = vector.shape_cast %320 : vector<1x4x1xf32> to vector<4x1xf32>
    %322 = vector.broadcast %321 : vector<4x1xf32> to vector<4x256xf32>
    %323 = arith.mulf %322, %80 : vector<4x256xf32>
    %324 = arith.addf %319, %323 : vector<4x256xf32>
    %c22 = arith.constant 22 : index
    %c0_108 = arith.constant 0 : index
    %c0_109 = arith.constant 0 : index
    %325 = vector.load %arg4[%c22, %c0_108, %c0_109] : memref<49x4x1xf32, #tpu.memory_space<vmem>>, vector<1x4x1xf32>
    %326 = vector.shape_cast %325 : vector<1x4x1xf32> to vector<4x1xf32>
    %327 = vector.broadcast %326 : vector<4x1xf32> to vector<4x256xf32>
    %328 = arith.mulf %327, %94 : vector<4x256xf32>
    %329 = arith.addf %324, %328 : vector<4x256xf32>
    %c23 = arith.constant 23 : index
    %c0_110 = arith.constant 0 : index
    %c0_111 = arith.constant 0 : index
    %330 = vector.load %arg4[%c23, %c0_110, %c0_111] : memref<49x4x1xf32, #tpu.memory_space<vmem>>, vector<1x4x1xf32>
    %331 = vector.shape_cast %330 : vector<1x4x1xf32> to vector<4x1xf32>
    %332 = vector.broadcast %331 : vector<4x1xf32> to vector<4x256xf32>
    %333 = arith.mulf %332, %108 : vector<4x256xf32>
    %334 = arith.addf %329, %333 : vector<4x256xf32>
    %c24 = arith.constant 24 : index
    %c0_112 = arith.constant 0 : index
    %c0_113 = arith.constant 0 : index
    %335 = vector.load %arg4[%c24, %c0_112, %c0_113] : memref<49x4x1xf32, #tpu.memory_space<vmem>>, vector<1x4x1xf32>
    %336 = vector.shape_cast %335 : vector<1x4x1xf32> to vector<4x1xf32>
    %337 = vector.broadcast %336 : vector<4x1xf32> to vector<4x256xf32>
    %338 = arith.mulf %337, %121 : vector<4x256xf32>
    %339 = arith.addf %334, %338 : vector<4x256xf32>
    %c25 = arith.constant 25 : index
    %c0_114 = arith.constant 0 : index
    %c0_115 = arith.constant 0 : index
    %340 = vector.load %arg4[%c25, %c0_114, %c0_115] : memref<49x4x1xf32, #tpu.memory_space<vmem>>, vector<1x4x1xf32>
    %341 = vector.shape_cast %340 : vector<1x4x1xf32> to vector<4x1xf32>
    %342 = vector.broadcast %341 : vector<4x1xf32> to vector<4x256xf32>
    %343 = arith.mulf %342, %135 : vector<4x256xf32>
    %344 = arith.addf %339, %343 : vector<4x256xf32>
    %c26 = arith.constant 26 : index
    %c0_116 = arith.constant 0 : index
    %c0_117 = arith.constant 0 : index
    %345 = vector.load %arg4[%c26, %c0_116, %c0_117] : memref<49x4x1xf32, #tpu.memory_space<vmem>>, vector<1x4x1xf32>
    %346 = vector.shape_cast %345 : vector<1x4x1xf32> to vector<4x1xf32>
    %347 = vector.broadcast %346 : vector<4x1xf32> to vector<4x256xf32>
    %348 = arith.mulf %347, %149 : vector<4x256xf32>
    %349 = arith.addf %344, %348 : vector<4x256xf32>
    %c27 = arith.constant 27 : index
    %c0_118 = arith.constant 0 : index
    %c0_119 = arith.constant 0 : index
    %350 = vector.load %arg4[%c27, %c0_118, %c0_119] : memref<49x4x1xf32, #tpu.memory_space<vmem>>, vector<1x4x1xf32>
    %351 = vector.shape_cast %350 : vector<1x4x1xf32> to vector<4x1xf32>
    %352 = vector.broadcast %351 : vector<4x1xf32> to vector<4x256xf32>
    %353 = arith.mulf %352, %163 : vector<4x256xf32>
    %354 = arith.addf %349, %353 : vector<4x256xf32>
    %c0_i32_120 = arith.constant 0 : i32
    %355 = vector.broadcast %c0_i32_120 : i32 to vector<1x256xi32>
    %356 = arith.addi %50, %355 : vector<1x256xi32>
    %c0_i32_121 = arith.constant 0 : i32
    %357 = vector.broadcast %c0_i32_121 : i32 to vector<1x256xi32>
    %358 = arith.cmpi sge, %356, %357 : vector<1x256xi32>
    %c0_i32_122 = arith.constant 0 : i32
    %359 = vector.broadcast %c0_i32_122 : i32 to vector<1x256xi32>
    %360 = arith.addi %50, %359 : vector<1x256xi32>
    %c256_i32_123 = arith.constant 256 : i32
    %361 = vector.broadcast %c256_i32_123 : i32 to vector<1x256xi32>
    %362 = arith.cmpi slt, %360, %361 : vector<1x256xi32>
    %363 = arith.andi %358, %362 : vector<1x256xi1>
    %364 = arith.extui %363 : vector<1x256xi1> to vector<1x256xi32>
    %365 = arith.sitofp %364 : vector<1x256xi32> to vector<1x256xf32>
    %366 = vector.broadcast %365 : vector<1x256xf32> to vector<4x256xf32>
    %367 = arith.mulf %354, %366 : vector<4x256xf32>
    %368 = arith.addf %267, %367 : vector<4x256xf32>
    %cst_124 = arith.constant 0.000000e+00 : f32
    %369 = vector.broadcast %cst_124 : f32 to vector<4x256xf32>
    %c28 = arith.constant 28 : index
    %c0_125 = arith.constant 0 : index
    %c0_126 = arith.constant 0 : index
    %370 = vector.load %arg4[%c28, %c0_125, %c0_126] : memref<49x4x1xf32, #tpu.memory_space<vmem>>, vector<1x4x1xf32>
    %371 = vector.shape_cast %370 : vector<1x4x1xf32> to vector<4x1xf32>
    %372 = vector.broadcast %371 : vector<4x1xf32> to vector<4x256xf32>
    %373 = arith.mulf %372, %80 : vector<4x256xf32>
    %374 = arith.addf %369, %373 : vector<4x256xf32>
    %c29 = arith.constant 29 : index
    %c0_127 = arith.constant 0 : index
    %c0_128 = arith.constant 0 : index
    %375 = vector.load %arg4[%c29, %c0_127, %c0_128] : memref<49x4x1xf32, #tpu.memory_space<vmem>>, vector<1x4x1xf32>
    %376 = vector.shape_cast %375 : vector<1x4x1xf32> to vector<4x1xf32>
    %377 = vector.broadcast %376 : vector<4x1xf32> to vector<4x256xf32>
    %378 = arith.mulf %377, %94 : vector<4x256xf32>
    %379 = arith.addf %374, %378 : vector<4x256xf32>
    %c30 = arith.constant 30 : index
    %c0_129 = arith.constant 0 : index
    %c0_130 = arith.constant 0 : index
    %380 = vector.load %arg4[%c30, %c0_129, %c0_130] : memref<49x4x1xf32, #tpu.memory_space<vmem>>, vector<1x4x1xf32>
    %381 = vector.shape_cast %380 : vector<1x4x1xf32> to vector<4x1xf32>
    %382 = vector.broadcast %381 : vector<4x1xf32> to vector<4x256xf32>
    %383 = arith.mulf %382, %108 : vector<4x256xf32>
    %384 = arith.addf %379, %383 : vector<4x256xf32>
    %c31 = arith.constant 31 : index
    %c0_131 = arith.constant 0 : index
    %c0_132 = arith.constant 0 : index
    %385 = vector.load %arg4[%c31, %c0_131, %c0_132] : memref<49x4x1xf32, #tpu.memory_space<vmem>>, vector<1x4x1xf32>
    %386 = vector.shape_cast %385 : vector<1x4x1xf32> to vector<4x1xf32>
    %387 = vector.broadcast %386 : vector<4x1xf32> to vector<4x256xf32>
    %388 = arith.mulf %387, %121 : vector<4x256xf32>
    %389 = arith.addf %384, %388 : vector<4x256xf32>
    %c32 = arith.constant 32 : index
    %c0_133 = arith.constant 0 : index
    %c0_134 = arith.constant 0 : index
    %390 = vector.load %arg4[%c32, %c0_133, %c0_134] : memref<49x4x1xf32, #tpu.memory_space<vmem>>, vector<1x4x1xf32>
    %391 = vector.shape_cast %390 : vector<1x4x1xf32> to vector<4x1xf32>
    %392 = vector.broadcast %391 : vector<4x1xf32> to vector<4x256xf32>
    %393 = arith.mulf %392, %135 : vector<4x256xf32>
    %394 = arith.addf %389, %393 : vector<4x256xf32>
    %c33 = arith.constant 33 : index
    %c0_135 = arith.constant 0 : index
    %c0_136 = arith.constant 0 : index
    %395 = vector.load %arg4[%c33, %c0_135, %c0_136] : memref<49x4x1xf32, #tpu.memory_space<vmem>>, vector<1x4x1xf32>
    %396 = vector.shape_cast %395 : vector<1x4x1xf32> to vector<4x1xf32>
    %397 = vector.broadcast %396 : vector<4x1xf32> to vector<4x256xf32>
    %398 = arith.mulf %397, %149 : vector<4x256xf32>
    %399 = arith.addf %394, %398 : vector<4x256xf32>
    %c34 = arith.constant 34 : index
    %c0_137 = arith.constant 0 : index
    %c0_138 = arith.constant 0 : index
    %400 = vector.load %arg4[%c34, %c0_137, %c0_138] : memref<49x4x1xf32, #tpu.memory_space<vmem>>, vector<1x4x1xf32>
    %401 = vector.shape_cast %400 : vector<1x4x1xf32> to vector<4x1xf32>
    %402 = vector.broadcast %401 : vector<4x1xf32> to vector<4x256xf32>
    %403 = arith.mulf %402, %163 : vector<4x256xf32>
    %404 = arith.addf %399, %403 : vector<4x256xf32>
    %c16_i32_139 = arith.constant 16 : i32
    %405 = vector.broadcast %c16_i32_139 : i32 to vector<1x256xi32>
    %406 = arith.addi %50, %405 : vector<1x256xi32>
    %c0_i32_140 = arith.constant 0 : i32
    %407 = vector.broadcast %c0_i32_140 : i32 to vector<1x256xi32>
    %408 = arith.cmpi sge, %406, %407 : vector<1x256xi32>
    %c16_i32_141 = arith.constant 16 : i32
    %409 = vector.broadcast %c16_i32_141 : i32 to vector<1x256xi32>
    %410 = arith.addi %50, %409 : vector<1x256xi32>
    %c256_i32_142 = arith.constant 256 : i32
    %411 = vector.broadcast %c256_i32_142 : i32 to vector<1x256xi32>
    %412 = arith.cmpi slt, %410, %411 : vector<1x256xi32>
    %413 = arith.andi %408, %412 : vector<1x256xi1>
    %414 = arith.extui %413 : vector<1x256xi1> to vector<1x256xi32>
    %415 = arith.sitofp %414 : vector<1x256xi32> to vector<1x256xf32>
    %c240_i32 = arith.constant 240 : i32
    %416 = tpu.dynamic_rotate %404 by %c240_i32 dim 1 : vector<4x256xf32>, i32 -> vector<4x256xf32>
    %417 = vector.broadcast %415 : vector<1x256xf32> to vector<4x256xf32>
    %418 = arith.mulf %416, %417 : vector<4x256xf32>
    %419 = arith.addf %318, %418 : vector<4x256xf32>
    %cst_143 = arith.constant 0.000000e+00 : f32
    %420 = vector.broadcast %cst_143 : f32 to vector<4x256xf32>
    %c35 = arith.constant 35 : index
    %c0_144 = arith.constant 0 : index
    %c0_145 = arith.constant 0 : index
    %421 = vector.load %arg4[%c35, %c0_144, %c0_145] : memref<49x4x1xf32, #tpu.memory_space<vmem>>, vector<1x4x1xf32>
    %422 = vector.shape_cast %421 : vector<1x4x1xf32> to vector<4x1xf32>
    %423 = vector.broadcast %422 : vector<4x1xf32> to vector<4x256xf32>
    %424 = arith.mulf %423, %80 : vector<4x256xf32>
    %425 = arith.addf %420, %424 : vector<4x256xf32>
    %c36 = arith.constant 36 : index
    %c0_146 = arith.constant 0 : index
    %c0_147 = arith.constant 0 : index
    %426 = vector.load %arg4[%c36, %c0_146, %c0_147] : memref<49x4x1xf32, #tpu.memory_space<vmem>>, vector<1x4x1xf32>
    %427 = vector.shape_cast %426 : vector<1x4x1xf32> to vector<4x1xf32>
    %428 = vector.broadcast %427 : vector<4x1xf32> to vector<4x256xf32>
    %429 = arith.mulf %428, %94 : vector<4x256xf32>
    %430 = arith.addf %425, %429 : vector<4x256xf32>
    %c37 = arith.constant 37 : index
    %c0_148 = arith.constant 0 : index
    %c0_149 = arith.constant 0 : index
    %431 = vector.load %arg4[%c37, %c0_148, %c0_149] : memref<49x4x1xf32, #tpu.memory_space<vmem>>, vector<1x4x1xf32>
    %432 = vector.shape_cast %431 : vector<1x4x1xf32> to vector<4x1xf32>
    %433 = vector.broadcast %432 : vector<4x1xf32> to vector<4x256xf32>
    %434 = arith.mulf %433, %108 : vector<4x256xf32>
    %435 = arith.addf %430, %434 : vector<4x256xf32>
    %c38 = arith.constant 38 : index
    %c0_150 = arith.constant 0 : index
    %c0_151 = arith.constant 0 : index
    %436 = vector.load %arg4[%c38, %c0_150, %c0_151] : memref<49x4x1xf32, #tpu.memory_space<vmem>>, vector<1x4x1xf32>
    %437 = vector.shape_cast %436 : vector<1x4x1xf32> to vector<4x1xf32>
    %438 = vector.broadcast %437 : vector<4x1xf32> to vector<4x256xf32>
    %439 = arith.mulf %438, %121 : vector<4x256xf32>
    %440 = arith.addf %435, %439 : vector<4x256xf32>
    %c39 = arith.constant 39 : index
    %c0_152 = arith.constant 0 : index
    %c0_153 = arith.constant 0 : index
    %441 = vector.load %arg4[%c39, %c0_152, %c0_153] : memref<49x4x1xf32, #tpu.memory_space<vmem>>, vector<1x4x1xf32>
    %442 = vector.shape_cast %441 : vector<1x4x1xf32> to vector<4x1xf32>
    %443 = vector.broadcast %442 : vector<4x1xf32> to vector<4x256xf32>
    %444 = arith.mulf %443, %135 : vector<4x256xf32>
    %445 = arith.addf %440, %444 : vector<4x256xf32>
    %c40 = arith.constant 40 : index
    %c0_154 = arith.constant 0 : index
    %c0_155 = arith.constant 0 : index
    %446 = vector.load %arg4[%c40, %c0_154, %c0_155] : memref<49x4x1xf32, #tpu.memory_space<vmem>>, vector<1x4x1xf32>
    %447 = vector.shape_cast %446 : vector<1x4x1xf32> to vector<4x1xf32>
    %448 = vector.broadcast %447 : vector<4x1xf32> to vector<4x256xf32>
    %449 = arith.mulf %448, %149 : vector<4x256xf32>
    %450 = arith.addf %445, %449 : vector<4x256xf32>
    %c41 = arith.constant 41 : index
    %c0_156 = arith.constant 0 : index
    %c0_157 = arith.constant 0 : index
    %451 = vector.load %arg4[%c41, %c0_156, %c0_157] : memref<49x4x1xf32, #tpu.memory_space<vmem>>, vector<1x4x1xf32>
    %452 = vector.shape_cast %451 : vector<1x4x1xf32> to vector<4x1xf32>
    %453 = vector.broadcast %452 : vector<4x1xf32> to vector<4x256xf32>
    %454 = arith.mulf %453, %163 : vector<4x256xf32>
    %455 = arith.addf %450, %454 : vector<4x256xf32>
    %c32_i32_158 = arith.constant 32 : i32
    %456 = vector.broadcast %c32_i32_158 : i32 to vector<1x256xi32>
    %457 = arith.addi %50, %456 : vector<1x256xi32>
    %c0_i32_159 = arith.constant 0 : i32
    %458 = vector.broadcast %c0_i32_159 : i32 to vector<1x256xi32>
    %459 = arith.cmpi sge, %457, %458 : vector<1x256xi32>
    %c32_i32_160 = arith.constant 32 : i32
    %460 = vector.broadcast %c32_i32_160 : i32 to vector<1x256xi32>
    %461 = arith.addi %50, %460 : vector<1x256xi32>
    %c256_i32_161 = arith.constant 256 : i32
    %462 = vector.broadcast %c256_i32_161 : i32 to vector<1x256xi32>
    %463 = arith.cmpi slt, %461, %462 : vector<1x256xi32>
    %464 = arith.andi %459, %463 : vector<1x256xi1>
    %465 = arith.extui %464 : vector<1x256xi1> to vector<1x256xi32>
    %466 = arith.sitofp %465 : vector<1x256xi32> to vector<1x256xf32>
    %c224_i32 = arith.constant 224 : i32
    %467 = tpu.dynamic_rotate %455 by %c224_i32 dim 1 : vector<4x256xf32>, i32 -> vector<4x256xf32>
    %468 = vector.broadcast %466 : vector<1x256xf32> to vector<4x256xf32>
    %469 = arith.mulf %467, %468 : vector<4x256xf32>
    %470 = arith.addf %368, %469 : vector<4x256xf32>
    %cst_162 = arith.constant 0.000000e+00 : f32
    %471 = vector.broadcast %cst_162 : f32 to vector<4x256xf32>
    %c42 = arith.constant 42 : index
    %c0_163 = arith.constant 0 : index
    %c0_164 = arith.constant 0 : index
    %472 = vector.load %arg4[%c42, %c0_163, %c0_164] : memref<49x4x1xf32, #tpu.memory_space<vmem>>, vector<1x4x1xf32>
    %473 = vector.shape_cast %472 : vector<1x4x1xf32> to vector<4x1xf32>
    %474 = vector.broadcast %473 : vector<4x1xf32> to vector<4x256xf32>
    %475 = arith.mulf %474, %80 : vector<4x256xf32>
    %476 = arith.addf %471, %475 : vector<4x256xf32>
    %c43 = arith.constant 43 : index
    %c0_165 = arith.constant 0 : index
    %c0_166 = arith.constant 0 : index
    %477 = vector.load %arg4[%c43, %c0_165, %c0_166] : memref<49x4x1xf32, #tpu.memory_space<vmem>>, vector<1x4x1xf32>
    %478 = vector.shape_cast %477 : vector<1x4x1xf32> to vector<4x1xf32>
    %479 = vector.broadcast %478 : vector<4x1xf32> to vector<4x256xf32>
    %480 = arith.mulf %479, %94 : vector<4x256xf32>
    %481 = arith.addf %476, %480 : vector<4x256xf32>
    %c44 = arith.constant 44 : index
    %c0_167 = arith.constant 0 : index
    %c0_168 = arith.constant 0 : index
    %482 = vector.load %arg4[%c44, %c0_167, %c0_168] : memref<49x4x1xf32, #tpu.memory_space<vmem>>, vector<1x4x1xf32>
    %483 = vector.shape_cast %482 : vector<1x4x1xf32> to vector<4x1xf32>
    %484 = vector.broadcast %483 : vector<4x1xf32> to vector<4x256xf32>
    %485 = arith.mulf %484, %108 : vector<4x256xf32>
    %486 = arith.addf %481, %485 : vector<4x256xf32>
    %c45 = arith.constant 45 : index
    %c0_169 = arith.constant 0 : index
    %c0_170 = arith.constant 0 : index
    %487 = vector.load %arg4[%c45, %c0_169, %c0_170] : memref<49x4x1xf32, #tpu.memory_space<vmem>>, vector<1x4x1xf32>
    %488 = vector.shape_cast %487 : vector<1x4x1xf32> to vector<4x1xf32>
    %489 = vector.broadcast %488 : vector<4x1xf32> to vector<4x256xf32>
    %490 = arith.mulf %489, %121 : vector<4x256xf32>
    %491 = arith.addf %486, %490 : vector<4x256xf32>
    %c46 = arith.constant 46 : index
    %c0_171 = arith.constant 0 : index
    %c0_172 = arith.constant 0 : index
    %492 = vector.load %arg4[%c46, %c0_171, %c0_172] : memref<49x4x1xf32, #tpu.memory_space<vmem>>, vector<1x4x1xf32>
    %493 = vector.shape_cast %492 : vector<1x4x1xf32> to vector<4x1xf32>
    %494 = vector.broadcast %493 : vector<4x1xf32> to vector<4x256xf32>
    %495 = arith.mulf %494, %135 : vector<4x256xf32>
    %496 = arith.addf %491, %495 : vector<4x256xf32>
    %c47 = arith.constant 47 : index
    %c0_173 = arith.constant 0 : index
    %c0_174 = arith.constant 0 : index
    %497 = vector.load %arg4[%c47, %c0_173, %c0_174] : memref<49x4x1xf32, #tpu.memory_space<vmem>>, vector<1x4x1xf32>
    %498 = vector.shape_cast %497 : vector<1x4x1xf32> to vector<4x1xf32>
    %499 = vector.broadcast %498 : vector<4x1xf32> to vector<4x256xf32>
    %500 = arith.mulf %499, %149 : vector<4x256xf32>
    %501 = arith.addf %496, %500 : vector<4x256xf32>
    %c48 = arith.constant 48 : index
    %c0_175 = arith.constant 0 : index
    %c0_176 = arith.constant 0 : index
    %502 = vector.load %arg4[%c48, %c0_175, %c0_176] : memref<49x4x1xf32, #tpu.memory_space<vmem>>, vector<1x4x1xf32>
    %503 = vector.shape_cast %502 : vector<1x4x1xf32> to vector<4x1xf32>
    %504 = vector.broadcast %503 : vector<4x1xf32> to vector<4x256xf32>
    %505 = arith.mulf %504, %163 : vector<4x256xf32>
    %506 = arith.addf %501, %505 : vector<4x256xf32>
    %c48_i32_177 = arith.constant 48 : i32
    %507 = vector.broadcast %c48_i32_177 : i32 to vector<1x256xi32>
    %508 = arith.addi %50, %507 : vector<1x256xi32>
    %c0_i32_178 = arith.constant 0 : i32
    %509 = vector.broadcast %c0_i32_178 : i32 to vector<1x256xi32>
    %510 = arith.cmpi sge, %508, %509 : vector<1x256xi32>
    %c48_i32_179 = arith.constant 48 : i32
    %511 = vector.broadcast %c48_i32_179 : i32 to vector<1x256xi32>
    %512 = arith.addi %50, %511 : vector<1x256xi32>
    %c256_i32_180 = arith.constant 256 : i32
    %513 = vector.broadcast %c256_i32_180 : i32 to vector<1x256xi32>
    %514 = arith.cmpi slt, %512, %513 : vector<1x256xi32>
    %515 = arith.andi %510, %514 : vector<1x256xi1>
    %516 = arith.extui %515 : vector<1x256xi1> to vector<1x256xi32>
    %517 = arith.sitofp %516 : vector<1x256xi32> to vector<1x256xf32>
    %c208_i32 = arith.constant 208 : i32
    %518 = tpu.dynamic_rotate %506 by %c208_i32 dim 1 : vector<4x256xf32>, i32 -> vector<4x256xf32>
    %519 = vector.broadcast %517 : vector<1x256xf32> to vector<4x256xf32>
    %520 = arith.mulf %518, %519 : vector<4x256xf32>
    %521 = arith.addf %419, %520 : vector<4x256xf32>
    %522 = arith.addf %521, %470 : vector<4x256xf32>
    %523 = vector.extract_strided_slice %522 {offsets = [0, 0], sizes = [2, 256], strides = [1, 1]} : vector<4x256xf32> to vector<2x256xf32>
    %524 = vector.extract_strided_slice %522 {offsets = [2, 0], sizes = [2, 256], strides = [1, 1]} : vector<4x256xf32> to vector<2x256xf32>
    %525 = arith.addf %523, %524 : vector<2x256xf32>
    %cst_181 = arith.constant 0.000000e+00 : f32
    %526 = vector.broadcast %cst_181 : f32 to vector<2x256xf32>
    %527 = arith.subf %526, %525 : vector<2x256xf32>
    %528 = math.exp %527 : vector<2x256xf32>
    %cst_182 = arith.constant 1.000000e+00 : f32
    %529 = vector.broadcast %cst_182 : f32 to vector<2x256xf32>
    %530 = arith.addf %529, %528 : vector<2x256xf32>
    %cst_183 = arith.constant 1.000000e+00 : f32
    %531 = vector.broadcast %cst_183 : f32 to vector<2x256xf32>
    %532 = arith.divf %531, %530 : vector<2x256xf32>
    %533 = vector.extract_strided_slice %32 {offsets = [0, 0], sizes = [16, 256], strides = [1, 1]} : vector<32x256xf32> to vector<16x256xf32>
    %534 = vector.extract_strided_slice %532 {offsets = [0, 0], sizes = [1, 256], strides = [1, 1]} : vector<2x256xf32> to vector<1x256xf32>
    %535 = vector.broadcast %534 : vector<1x256xf32> to vector<16x256xf32>
    %536 = arith.mulf %533, %535 : vector<16x256xf32>
    %c0_184 = arith.constant 0 : index
    %c0_185 = arith.constant 0 : index
    %537 = vector.load %arg5[%c0_184, %c0_185] : memref<32x256xf32, #tpu.memory_space<vmem>>, vector<16x256xf32>
    tpu.vector_store %arg5[%c0_184, %c0_185], %536 {strides = array<i32>} : memref<32x256xf32, #tpu.memory_space<vmem>>, vector<16x256xf32>,
    %538 = vector.extract_strided_slice %32 {offsets = [16, 0], sizes = [16, 256], strides = [1, 1]} : vector<32x256xf32> to vector<16x256xf32>
    %539 = vector.extract_strided_slice %532 {offsets = [1, 0], sizes = [1, 256], strides = [1, 1]} : vector<2x256xf32> to vector<1x256xf32>
    %540 = vector.broadcast %539 : vector<1x256xf32> to vector<16x256xf32>
    %541 = arith.mulf %538, %540 : vector<16x256xf32>
    %c16_186 = arith.constant 16 : index
    %c0_187 = arith.constant 0 : index
    %542 = vector.load %arg5[%c16_186, %c0_187] : memref<32x256xf32, #tpu.memory_space<vmem>>, vector<16x256xf32>
    tpu.vector_store %arg5[%c16_186, %c0_187], %541 {strides = array<i32>} : memref<32x256xf32, #tpu.memory_space<vmem>>, vector<16x256xf32>,
    return
  }
  func.func @transform_0(%arg0: i32) -> (i32, i32) {
    %c0_i32 = arith.constant 0 : i32
    %c0_i32_0 = arith.constant 0 : i32
    return %arg0, %c0_i32 : i32, i32
  }
  func.func @transform_1(%arg0: i32) -> (i32, i32) {
    %c0_i32 = arith.constant 0 : i32
    %c0_i32_0 = arith.constant 0 : i32
    %c0_i32_1 = arith.constant 0 : i32
    return %c0_i32, %c0_i32_0 : i32, i32
  }
  func.func @transform_2(%arg0: i32) -> (i32, i32) {
    %c0_i32 = arith.constant 0 : i32
    %c0_i32_0 = arith.constant 0 : i32
    %c0_i32_1 = arith.constant 0 : i32
    return %c0_i32, %c0_i32_0 : i32, i32
  }
  func.func @transform_3(%arg0: i32) -> (i32, i32, i32) {
    %c0_i32 = arith.constant 0 : i32
    %c0_i32_0 = arith.constant 0 : i32
    %c0_i32_1 = arith.constant 0 : i32
    %c0_i32_2 = arith.constant 0 : i32
    return %c0_i32, %c0_i32_0, %c0_i32_1 : i32, i32, i32
  }
  func.func @transform_4(%arg0: i32) -> (i32, i32) {
    %c0_i32 = arith.constant 0 : i32
    %c0_i32_0 = arith.constant 0 : i32
    return %arg0, %c0_i32 : i32, i32
  }
}

</mosaic_0001>

<llo_original>
// kernel: cbam_pallas.1
$region0: #{cbam_pallas.1}
  #allocation0 [shape = 'u32[]', space=smem, size = 0x4, offset = 0x4, fixed_abs, tag = 'smem constant byte address 0x4 - core index']
  #allocation1 [shape = 'u32[144,128]{1,0:T(1,128)}', space=vmem, size = 0x12000, scoped, tag = 'internal scratch']
  %s0 = inlined_call_operand.vmem [shape: f32[32,256], index: 0, kind: input, shape index: {}]
  %s1 = inlined_call_operand.vmem [shape: f32[2,16], index: 1, kind: input, shape index: {}]
  %s2 = inlined_call_operand.vmem [shape: f32[16,2], index: 2, kind: input, shape index: {}]
  %s3 = inlined_call_operand.vmem [shape: f32[49,4,1], index: 3, kind: input, shape index: {}]
  %s4 = inlined_call_operand.vmem [shape: f32[32,256], index: 4, kind: output, shape index: {}]
  %s5 = sld [smem:[#allocation0]]
  $region26: #{cbam_pallas.1} parent=0
    _
  %s7 = ssub.s32 1, %s5
  %s8 = scalar_select 0, %s7, %s5
  // Predicated region
  $region2: #{cbam_pallas.1} parent=0 // pred_check
    _
  $region3: #{cbam_pallas.1} parent=0 // pred_check_branch
    %10 = sbr.rel (0) target = $region5
  $region4: #{cbam_pallas.1} parent=0 // pred_region
    _
  $region5: #{cbam_pallas.1} parent=0 // pred_fallthru
    _
  // Predicated region
  $region6: #{cbam_pallas.1} parent=0 // pred_check
    _
  $region7: #{cbam_pallas.1} parent=0 // pred_check_branch
    %12 = sbr.rel (0) target = $region9
  $region8: #{cbam_pallas.1} parent=0 // pred_region
    _
  $region9: #{cbam_pallas.1} parent=0 // pred_fallthru
    _
  // Predicated region
  $region10: #{cbam_pallas.1} parent=0 // pred_check
    _
  $region11: #{cbam_pallas.1} parent=0 // pred_check_branch
    %14 = sbr.rel (0) target = $region13
  $region12: #{cbam_pallas.1} parent=0 // pred_region
    _
  $region13: #{cbam_pallas.1} parent=0 // pred_fallthru
    _
  // Predicated region
  $region14: #{cbam_pallas.1} parent=0 // pred_check
    _
  $region15: #{cbam_pallas.1} parent=0 // pred_check_branch
    %16 = sbr.rel (0) target = $region17
  $region16: #{cbam_pallas.1} parent=0 // pred_region
    _
  $region17: #{cbam_pallas.1} parent=0 // pred_fallthru
    _
  %v17 = vld [vmem:[%s0] sm:$0xff]
  %v18 = vld [vmem:[%s0 + $0x8] sm:$0xff]
  %v19 = vld [vmem:[%s0 + $0x10] sm:$0xff]
  %v20 = vld [vmem:[%s0 + $0x18] sm:$0xff]
  %v21 = vld [vmem:[%s0 + $0x20] sm:$0xff]
  %v22 = vld [vmem:[%s0 + $0x28] sm:$0xff]
  %v23 = vld [vmem:[%s0 + $0x30] sm:$0xff]
  %v24 = vld [vmem:[%s0 + $0x38] sm:$0xff]
  %v25 = vadd.f32 %v17, %v18
  %26 = vadd.xlane.f32.xlu0 %v25
  %v27 = vpop.xlane.xlu0 %26
  %v28 = vadd.f32 %v19, %v20
  %29 = vadd.xlane.f32.xlu0 %v28
  %v30 = vpop.xlane.xlu0 %29
  %v31 = vadd.f32 %v21, %v22
  %32 = vadd.xlane.f32.xlu0 %v31
  %v33 = vpop.xlane.xlu0 %32
  %v34 = vadd.f32 %v23, %v24
  %35 = vadd.xlane.f32.xlu0 %v34
  %v36 = vpop.xlane.xlu0 %35
  %v37 = vrcp.pop 256.0
  %v38 = vmul.f32 %v27, %v37
  %v39 = vmul.f32 %v30, %v37
  %v40 = vmul.f32 %v33, %v37
  %v41 = vmul.f32 %v36, %v37
  %v42 = vmax.f32 %v17, %v18
  %43 = vmax.xlane.f32.xlu0 %v42
  %v44 = vpop.xlane.xlu0 %43
  %v45 = vmax.f32 %v19, %v20
  %46 = vmax.xlane.f32.xlu0 %v45
  %v47 = vpop.xlane.xlu0 %46
  %v48 = vmax.f32 %v21, %v22
  %49 = vmax.xlane.f32.xlu0 %v48
  %v50 = vpop.xlane.xlu0 %49
  %v51 = vmax.f32 %v23, %v24
  %52 = vmax.xlane.f32.xlu0 %v51
  %v53 = vpop.xlane.xlu0 %52
  %vm54 = vcmask 7168
  %v55 = vsel %vm54, %v38, %v44
  %v56 = vsel %vm54, %v39, %v47
  %v57 = vsel %vm54, %v40, %v50
  %v58 = vsel %vm54, %v41, %v53
  %61 = vrot.lane.b32.xlu0 %v57, 2
  %v62 = vpop.permute.xlu0 %61
  %63 = vrot.lane.b32.xlu0 %v58, 2
  %v64 = vpop.permute.xlu0 %63
  %vm67 = vcmask 15360
  %v68 = vsel %vm67, %v55, %v62
  %v69 = vsel %vm67, %v56, %v64
  %v70 = vld [vmem:[%s1] sm:$0x3]
  %vm71 = vcmask 130048
  %v73 = vsel %vm71, %v70, 0
  %75 = vmatprep.subr.mxu0 0.0
  %76 = vmatpush1.msra.mxu0 %v68
  %77 = vmatprep.subr.mxu0 0.0
  %78 = vmatpush1.msra.mxu0 %v69
  %79 = vmatprep.subr.mxu0 0.0
  %80 = vmatpush1.msra.mxu0 0.0
  %81 = vmatprep.subr.mxu0 0.0
  %82 = vmatpush1.msra.mxu0 0.0
  %83 = vmatprep.subr.mxu0 0.0
  %84 = vmatpush1.msra.mxu0 0.0
  %85 = vmatprep.subr.mxu0 0.0
  %86 = vmatpush1.msra.mxu0 0.0
  %87 = vmatprep.subr.mxu0 0.0
  %88 = vmatpush1.msra.mxu0 0.0
  %89 = vmatprep.subr.mxu0 0.0
  %90 = vmatpush1.msra.mxu0 0.0
  %91 = vmatprep.subr.mxu0 0.0
  %92 = vmatpush1.msra.mxu0 0.0
  %93 = vmatprep.subr.mxu0 0.0
  %94 = vmatpush1.msra.mxu0 0.0
  %95 = vmatprep.subr.mxu0 0.0
  %96 = vmatpush1.msra.mxu0 0.0
  %97 = vmatprep.subr.mxu0 0.0
  %98 = vmatpush1.msra.mxu0 0.0
  %99 = vmatprep.subr.mxu0 0.0
  %100 = vmatpush1.msra.mxu0 0.0
  %101 = vmatprep.subr.mxu0 0.0
  %102 = vmatpush1.msra.mxu0 0.0
  %103 = vmatprep.subr.mxu0 0.0
  %104 = vmatpush1.msra.mxu0 0.0
  %105 = vmatprep.subr.mxu0 0.0
  %106 = vmatpush1.msra.mxu0 0.0
  %107 = vmatprep.subr.mxu0 0.0
  %108 = vmatpush1.msra.mxu0 0.0
  %109 = vmatprep.subr.mxu0 0.0
  %110 = vmatpush1.msra.mxu0 0.0
  %111 = vmatprep.subr.mxu0 0.0
  %112 = vmatpush1.msra.mxu0 0.0
  %113 = vmatprep.subr.mxu0 0.0
  %114 = vmatpush1.msra.mxu0 0.0
  %115 = vmatprep.subr.mxu0 0.0
  %116 = vmatpush1.msra.mxu0 0.0
  %117 = vmatprep.subr.mxu0 0.0
  %118 = vmatpush1.msra.mxu0 0.0
  %119 = vmatprep.subr.mxu0 0.0
  %120 = vmatpush1.msra.mxu0 0.0
  %121 = vmatprep.subr.mxu0 0.0
  %122 = vmatpush1.msra.mxu0 0.0
  %123 = vmatprep.subr.mxu0 0.0
  %124 = vmatpush1.msra.mxu0 0.0
  %125 = vmatprep.subr.mxu0 0.0
  %126 = vmatpush1.msra.mxu0 0.0
  %127 = vmatprep.subr.mxu0 0.0
  %128 = vmatpush1.msra.mxu0 0.0
  %129 = vmatprep.subr.mxu0 0.0
  %130 = vmatpush1.msra.mxu0 0.0
  %131 = vmatprep.subr.mxu0 0.0
  %132 = vmatpush1.msra.mxu0 0.0
  %133 = vmatprep.subr.mxu0 0.0
  %134 = vmatpush1.msra.mxu0 0.0
  %135 = vmatprep.subr.mxu0 0.0
  %136 = vmatpush1.msra.mxu0 0.0
  %137 = vmatprep.subr.mxu0 0.0
  %138 = vmatpush1.msra.mxu0 0.0
  %139 = vmatprep.mubr.f32.mxu0 0.0
  %140 = vmatmul.mubr.f32.gmra.mrb[0].mxu0 %v73
  %v141 = vpop.f32.mrb[0].mxu0
  %v142 = vadd.f32 0.0, %v141
  %v143 = vpop.f32.mrb[0].mxu0
  %144 = vdwg.mxu0
  %v145 = vmax.f32 %v142, 0.0
  %v146 = vld [vmem:[%s2] sm:$0xff]
  %v147 = vld [vmem:[%s2 + $0x8] sm:$0xff]
  %v149 = vsel %vm67, %v146, 0
  %v152 = vsel %vm67, %v147, 0
  %vm154 = vcmask 1041408
  %v156 = vsel %vm154, %v145, 0
  %158 = vmatprep.subr.mxu0 0.0
  %159 = vmatpush1.msra.mxu0 %v156
  %160 = vmatprep.subr.mxu0 0.0
  %161 = vmatpush1.msra.mxu0 0.0
  %162 = vmatprep.subr.mxu0 0.0
  %163 = vmatpush1.msra.mxu0 0.0
  %164 = vmatprep.subr.mxu0 0.0
  %165 = vmatpush1.msra.mxu0 0.0
  %166 = vmatprep.subr.mxu0 0.0
  %167 = vmatpush1.msra.mxu0 0.0
  %168 = vmatprep.subr.mxu0 0.0
  %169 = vmatpush1.msra.mxu0 0.0
  %170 = vmatprep.subr.mxu0 0.0
  %171 = vmatpush1.msra.mxu0 0.0
  %172 = vmatprep.subr.mxu0 0.0
  %173 = vmatpush1.msra.mxu0 0.0
  %174 = vmatprep.subr.mxu0 0.0
  %175 = vmatpush1.msra.mxu0 0.0
  %176 = vmatprep.subr.mxu0 0.0
  %177 = vmatpush1.msra.mxu0 0.0
  %178 = vmatprep.subr.mxu0 0.0
  %179 = vmatpush1.msra.mxu0 0.0
  %180 = vmatprep.subr.mxu0 0.0
  %181 = vmatpush1.msra.mxu0 0.0
  %182 = vmatprep.subr.mxu0 0.0
  %183 = vmatpush1.msra.mxu0 0.0
  %184 = vmatprep.subr.mxu0 0.0
  %185 = vmatpush1.msra.mxu0 0.0
  %186 = vmatprep.subr.mxu0 0.0
  %187 = vmatpush1.msra.mxu0 0.0
  %188 = vmatprep.subr.mxu0 0.0
  %189 = vmatpush1.msra.mxu0 0.0
  %190 = vmatprep.subr.mxu0 0.0
  %191 = vmatpush1.msra.mxu0 0.0
  %192 = vmatprep.subr.mxu0 0.0
  %193 = vmatpush1.msra.mxu0 0.0
  %194 = vmatprep.subr.mxu0 0.0
  %195 = vmatpush1.msra.mxu0 0.0
  %196 = vmatprep.subr.mxu0 0.0
  %197 = vmatpush1.msra.mxu0 0.0
  %198 = vmatprep.subr.mxu0 0.0
  %199 = vmatpush1.msra.mxu0 0.0
  %200 = vmatprep.subr.mxu0 0.0
  %201 = vmatpush1.msra.mxu0 0.0
  %202 = vmatprep.subr.mxu0 0.0
  %203 = vmatpush1.msra.mxu0 0.0
  %204 = vmatprep.subr.mxu0 0.0
  %205 = vmatpush1.msra.mxu0 0.0
  %206 = vmatprep.subr.mxu0 0.0
  %207 = vmatpush1.msra.mxu0 0.0
  %208 = vmatprep.subr.mxu0 0.0
  %209 = vmatpush1.msra.mxu0 0.0
  %210 = vmatprep.subr.mxu0 0.0
  %211 = vmatpush1.msra.mxu0 0.0
  %212 = vmatprep.subr.mxu0 0.0
  %213 = vmatpush1.msra.mxu0 0.0
  %214 = vmatprep.subr.mxu0 0.0
  %215 = vmatpush1.msra.mxu0 0.0
  %216 = vmatprep.subr.mxu0 0.0
  %217 = vmatpush1.msra.mxu0 0.0
  %218 = vmatprep.subr.mxu0 0.0
  %219 = vmatpush1.msra.mxu0 0.0
  %220 = vmatprep.subr.mxu0 0.0
  %221 = vmatpush1.msra.mxu0 0.0
  %222 = vmatprep.mubr.f32.mxu0 0.0
  %223 = vmatmul.mubr.f32.gmra.mrb[0].mxu0 %v149
  %v224 = vpop.f32.mrb[0].mxu0
  %v225 = vadd.f32 0.0, %v224
  %v226 = vpop.f32.mrb[0].mxu0
  %227 = vmatprep.mubr.f32.mxu0 0.0
  %228 = vmatmul.mubr.f32.gmra.mrb[0].mxu0 %v152
  %v229 = vpop.f32.mrb[0].mxu0
  %v230 = vadd.f32 0.0, %v229
  %v231 = vpop.f32.mrb[0].mxu0
  %232 = vdwg.mxu0
  %235 = vrot.lane.b32.xlu0 %v225, 127
  %v236 = vpop.permute.xlu0 %235
  %237 = vrot.lane.b32.xlu0 %v230, 127
  %v238 = vpop.permute.xlu0 %237
  %v241 = vadd.f32 %v225, %v236
  %v242 = vadd.f32 %v230, %v238
  %245 = vrot.lane.b32.xlu0 %v241, 126
  %v246 = vpop.permute.xlu0 %245
  %247 = vrot.lane.b32.xlu0 %v242, 126
  %v248 = vpop.permute.xlu0 %247
  %v251 = vsub.f32 0.0, %v241
  %v252 = vsub.f32 0.0, %v242
  %v253 = vsub.f32 0.0, %v246
  %v254 = vsub.f32 0.0, %v248
  %v255 = vmul.f32 %v251, 1.442695
  %v256 = vpow.pop %v255
  %v257 = vmul.f32 %v252, 1.442695
  %v258 = vpow.pop %v257
  %v259 = vmul.f32 %v253, 1.442695
  %v260 = vpow.pop %v259
  %v261 = vmul.f32 %v254, 1.442695
  %v262 = vpow.pop %v261
  %v263 = vadd.f32 %v256, 1.0
  %v264 = vadd.f32 %v258, 1.0
  %v265 = vadd.f32 %v260, 1.0
  %v266 = vadd.f32 %v262, 1.0
  %v267 = vrcp.pop %v263
  %v268 = vmul.f32 1.0, %v267
  %v269 = vrcp.pop %v264
  %v270 = vmul.f32 1.0, %v269
  %v271 = vrcp.pop %v265
  %v272 = vmul.f32 1.0, %v271
  %v273 = vrcp.pop %v266
  %v274 = vmul.f32 1.0, %v273
  %276 = vset.pattern.permute.xlu0 0
  %277 = vperm.xlu0 %276, %v268
  %v278 = vpop.permute.xlu0 %277
  %281 = vset.pattern.permute.xlu0 0
  %282 = vperm.xlu0 %281, %v270
  %v283 = vpop.permute.xlu0 %282
  %286 = vset.pattern.permute.xlu0 0
  %287 = vperm.xlu0 %286, %v272
  %v288 = vpop.permute.xlu0 %287
  %291 = vset.pattern.permute.xlu0 0
  %292 = vperm.xlu0 %291, %v274
  %v293 = vpop.permute.xlu0 %292
  %v295 = vmul.f32 %v17, %v278
  %v296 = vmul.f32 %v18, %v278
  %v297 = vmul.f32 %v19, %v283
  %v298 = vmul.f32 %v20, %v283
  %v299 = vmul.f32 %v21, %v288
  %v300 = vmul.f32 %v22, %v288
  %v301 = vmul.f32 %v23, %v293
  %v302 = vmul.f32 %v24, %v293
  %v303 = vadd.f32 %v295, %v297
  %v304 = vrot.slane %v303, 4
  %v305 = vadd.f32 %v303, %v304
  %v306 = vrot.slane %v305, 2
  %v307 = vadd.f32 %v305, %v306
  %v308 = vrot.slane %v307, 1
  %v309 = vadd.f32 %v307, %v308
  %v310 = vadd.f32 %v296, %v298
  %v311 = vrot.slane %v310, 4
  %v312 = vadd.f32 %v310, %v311
  %v313 = vrot.slane %v312, 2
  %v314 = vadd.f32 %v312, %v313
  %v315 = vrot.slane %v314, 1
  %v316 = vadd.f32 %v314, %v315
  %v317 = vrcp.pop 16.0
  %v318 = vmul.f32 %v309, %v317
  %v319 = vmul.f32 %v316, %v317
  %v320 = vadd.f32 %v299, %v301
  %v321 = vrot.slane %v320, 4
  %v322 = vadd.f32 %v320, %v321
  %v323 = vrot.slane %v322, 2
  %v324 = vadd.f32 %v322, %v323
  %v325 = vrot.slane %v324, 1
  %v326 = vadd.f32 %v324, %v325
  %v327 = vadd.f32 %v300, %v302
  %v328 = vrot.slane %v327, 4
  %v329 = vadd.f32 %v327, %v328
  %v330 = vrot.slane %v329, 2
  %v331 = vadd.f32 %v329, %v330
  %v332 = vrot.slane %v331, 1
  %v333 = vadd.f32 %v331, %v332
  %v334 = vmul.f32 %v326, %v317
  %v335 = vmul.f32 %v333, %v317
  %v336 = vmax.f32 %v295, %v297
  %v337 = vrot.slane %v336, 4
  %v338 = vmax.f32 %v336, %v337
  %v339 = vrot.slane %v338, 2
  %v340 = vmax.f32 %v338, %v339
  %v341 = vrot.slane %v340, 1
  %v342 = vmax.f32 %v340, %v341
  %v343 = vmax.f32 %v296, %v298
  %v344 = vrot.slane %v343, 4
  %v345 = vmax.f32 %v343, %v344
  %v346 = vrot.slane %v345, 2
  %v347 = vmax.f32 %v345, %v346
  %v348 = vrot.slane %v347, 1
  %v349 = vmax.f32 %v347, %v348
  %v350 = vmax.f32 %v299, %v301
  %v351 = vrot.slane %v350, 4
  %v352 = vmax.f32 %v350, %v351
  %v353 = vrot.slane %v352, 2
  %v354 = vmax.f32 %v352, %v353
  %v355 = vrot.slane %v354, 1
  %v356 = vmax.f32 %v354, %v355
  %v357 = vmax.f32 %v300, %v302
  %v358 = vrot.slane %v357, 4
  %v359 = vmax.f32 %v357, %v358
  %v360 = vrot.slane %v359, 2
  %v361 = vmax.f32 %v359, %v360
  %v362 = vrot.slane %v361, 1
  %v363 = vmax.f32 %v361, %v362
  %vm364 = vcmask 1040384
  %v365 = vsel %vm364, %v318, %v334
  %v366 = vsel %vm364, %v319, %v335
  %v367 = vsel %vm154, %v365, %v342
  %v368 = vsel %vm154, %v366, %v349
  %vm369 = vcmask 1042432
  %v370 = vsel %vm369, %v367, %v356
  %v371 = vsel %vm369, %v368, %v363
  %v372 = vlaneseq
  %v373 = vand.u32 %v372, 127
  %v374 = vadd.s32 %v373, 128
  %vm375 = vcmp.lt.s32.totalorder %v373, 0
  %v376 = vsub.s32 0, %v373
  %v377 = vsel %vm375, %v376, %v373
  %v378 = vshrl.u32 %v377, 4
  %v379 = vand.u32 %v377, 15
  %v380 = vsub.s32 0, %v379
  %v381 = vsel %vm375, %v380, %v379
  %vm382 = vcmp.lt.s32.totalorder %v374, 0
  %v383 = vsub.s32 0, %v374
  %v384 = vsel %vm382, %v383, %v374
  %v385 = vshrl.u32 %v384, 4
  %v386 = vand.u32 %v384, 15
  %v387 = vsub.s32 0, %v386
  %v388 = vsel %vm382, %v387, %v386
  %vm389 = vcmp.ne.s32.totalorder %v381, 0
  %vm390 = vcmp.ne.s32.totalorder %v388, 0
  %vm391 = vcmp.lt.s32.totalorder %v381, 0
  %vm392 = vcmp.lt.s32.totalorder %v388, 0
  %vm393 = vmand %vm391, %vm389
  %vm394 = vmand %vm392, %vm390
  %v395 = vadd.s32 %v381, 16
  %v396 = vadd.s32 %v388, 16
  %v397 = vsel %vm393, %v395, %v381
  %v398 = vsel %vm394, %v396, %v388
  %v399 = vadd.s32 %v397, 4294967293
  %v400 = vadd.s32 %v398, 4294967293
  %vm401 = vcmp.ge.s32.totalorder %v399, 0
  %vm402 = vcmp.ge.s32.totalorder %v400, 0
  %vm403 = vcmp.lt.s32.totalorder %v399, 16
  %vm404 = vcmp.lt.s32.totalorder %v400, 16
  %vm405 = vmand %vm401, %vm403
  %vm406 = vmand %vm402, %vm404
  %v407 = vsel %vm405, 1, 0
  %v408 = vsel %vm406, 1, 0
  %v409 = vcvt.s32.f32 %v407
  %v410 = vcvt.s32.f32 %v408
  %411 = vrot.lane.b32.xlu0 %v370, 3
  %v412 = vpop.permute.xlu0 %411
  %413 = vrot.lane.b32.xlu0 %v371, 3
  %v414 = vpop.permute.xlu0 %413
  %vm415 = vcmp.lt.s32.totalorder %v373, 3
  %v416 = vsel %vm415, %v412, %v414
  %v417 = vsel %vm415, %v414, %v412
  %v418 = vmul.f32 %v417, %v409
  %v419 = vmul.f32 %v416, %v410
  %v420 = vadd.s32 %v397, 4294967294
  %v421 = vadd.s32 %v398, 4294967294
  %vm422 = vcmp.ge.s32.totalorder %v420, 0
  %vm423 = vcmp.ge.s32.totalorder %v421, 0
  %vm424 = vcmp.lt.s32.totalorder %v420, 16
  %vm425 = vcmp.lt.s32.totalorder %v421, 16
  %vm426 = vmand %vm422, %vm424
  %vm427 = vmand %vm423, %vm425
  %v428 = vsel %vm426, 1, 0
  %v429 = vsel %vm427, 1, 0
  %v430 = vcvt.s32.f32 %v428
  %v431 = vcvt.s32.f32 %v429
  %432 = vrot.lane.b32.xlu0 %v370, 2
  %v433 = vpop.permute.xlu0 %432
  %434 = vrot.lane.b32.xlu0 %v371, 2
  %v435 = vpop.permute.xlu0 %434
  %vm436 = vcmp.lt.s32.totalorder %v373, 2
  %v437 = vsel %vm436, %v433, %v435
  %v438 = vsel %vm436, %v435, %v433
  %v439 = vmul.f32 %v438, %v430
  %v440 = vmul.f32 %v437, %v431
  %v441 = vadd.s32 %v397, 4294967295
  %v442 = vadd.s32 %v398, 4294967295
  %vm443 = vcmp.ge.s32.totalorder %v441, 0
  %vm444 = vcmp.ge.s32.totalorder %v442, 0
  %vm445 = vcmp.lt.s32.totalorder %v441, 16
  %vm446 = vcmp.lt.s32.totalorder %v442, 16
  %vm447 = vmand %vm443, %vm445
  %vm448 = vmand %vm444, %vm446
  %v449 = vsel %vm447, 1, 0
  %v450 = vsel %vm448, 1, 0
  %v451 = vcvt.s32.f32 %v449
  %v452 = vcvt.s32.f32 %v450
  %453 = vrot.lane.b32.xlu0 %v370, 1
  %v454 = vpop.permute.xlu0 %453
  %455 = vrot.lane.b32.xlu0 %v371, 1
  %v456 = vpop.permute.xlu0 %455
  %vm457 = vcmp.lt.s32.totalorder %v373, 1
  %v458 = vsel %vm457, %v454, %v456
  %v459 = vsel %vm457, %v456, %v454
  %v460 = vmul.f32 %v459, %v451
  %v461 = vmul.f32 %v458, %v452
  %vm462 = vcmp.ge.s32.totalorder %v397, 0
  %vm463 = vcmp.ge.s32.totalorder %v398, 0
  %vm464 = vcmp.lt.s32.totalorder %v397, 16
  %vm465 = vcmp.lt.s32.totalorder %v398, 16
  %vm466 = vmand %vm462, %vm464
  %vm467 = vmand %vm463, %vm465
  %v468 = vsel %vm466, 1, 0
  %v469 = vsel %vm467, 1, 0
  %v470 = vcvt.s32.f32 %v468
  %v471 = vcvt.s32.f32 %v469
  %v472 = vmul.f32 %v370, %v470
  %v473 = vmul.f32 %v371, %v471
  %v474 = vadd.s32 %v397, 1
  %v475 = vadd.s32 %v398, 1
  %vm476 = vcmp.ge.s32.totalorder %v474, 0
  %vm477 = vcmp.ge.s32.totalorder %v475, 0
  %vm478 = vcmp.lt.s32.totalorder %v474, 16
  %vm479 = vcmp.lt.s32.totalorder %v475, 16
  %vm480 = vmand %vm476, %vm478
  %vm481 = vmand %vm477, %vm479
  %v482 = vsel %vm480, 1, 0
  %v483 = vsel %vm481, 1, 0
  %v484 = vcvt.s32.f32 %v482
  %v485 = vcvt.s32.f32 %v483
  %486 = vrot.lane.b32.xlu0 %v370, 127
  %v487 = vpop.permute.xlu0 %486
  %488 = vrot.lane.b32.xlu0 %v371, 127
  %v489 = vpop.permute.xlu0 %488
  %vm490 = vcmp.lt.s32.totalorder %v373, 127
  %v491 = vsel %vm490, %v487, %v489
  %v492 = vsel %vm490, %v489, %v487
  %v493 = vmul.f32 %v491, %v484
  %v494 = vmul.f32 %v492, %v485
  %v495 = vadd.s32 %v397, 2
  %v496 = vadd.s32 %v398, 2
  %vm497 = vcmp.ge.s32.totalorder %v495, 0
  %vm498 = vcmp.ge.s32.totalorder %v496, 0
  %vm499 = vcmp.lt.s32.totalorder %v495, 16
  %vm500 = vcmp.lt.s32.totalorder %v496, 16
  %vm501 = vmand %vm497, %vm499
  %vm502 = vmand %vm498, %vm500
  %v503 = vsel %vm501, 1, 0
  %v504 = vsel %vm502, 1, 0
  %v505 = vcvt.s32.f32 %v503
  %v506 = vcvt.s32.f32 %v504
  %507 = vrot.lane.b32.xlu0 %v370, 126
  %v508 = vpop.permute.xlu0 %507
  %509 = vrot.lane.b32.xlu0 %v371, 126
  %v510 = vpop.permute.xlu0 %509
  %vm511 = vcmp.lt.s32.totalorder %v373, 126
  %v512 = vsel %vm511, %v508, %v510
  %v513 = vsel %vm511, %v510, %v508
  %v514 = vmul.f32 %v512, %v505
  %v515 = vmul.f32 %v513, %v506
  %v516 = vadd.s32 %v397, 3
  %v517 = vadd.s32 %v398, 3
  %vm518 = vcmp.ge.s32.totalorder %v516, 0
  %vm519 = vcmp.ge.s32.totalorder %v517, 0
  %vm520 = vcmp.lt.s32.totalorder %v516, 16
  %vm521 = vcmp.lt.s32.totalorder %v517, 16
  %vm522 = vmand %vm518, %vm520
  %vm523 = vmand %vm519, %vm521
  %v524 = vsel %vm522, 1, 0
  %v525 = vsel %vm523, 1, 0
  %v526 = vcvt.s32.f32 %v524
  %v527 = vcvt.s32.f32 %v525
  %528 = vrot.lane.b32.xlu0 %v370, 125
  %v529 = vpop.permute.xlu0 %528
  %530 = vrot.lane.b32.xlu0 %v371, 125
  %v531 = vpop.permute.xlu0 %530
  %vm532 = vcmp.lt.s32.totalorder %v373, 125
  %v533 = vsel %vm532, %v529, %v531
  %v534 = vsel %vm532, %v531, %v529
  %v535 = vmul.f32 %v533, %v526
  %v536 = vmul.f32 %v534, %v527
  %v537 = vld [vmem:[%s3] sm:$0xf]
  %539 = vset.pattern.permute.xlu0 0
  %540 = vperm.xlu0 %539, %v537
  %v541 = vpop.permute.xlu0 %540
  %v543 = vmul.f32 %v541, %v418
  %v544 = vmul.f32 %v541, %v419
  %v545 = vadd.f32 %v543, 0.0
  %v546 = vadd.f32 %v544, 0.0
  %s547 = scalar_lea.vmem %s3, 4
  %v548 = vld [vmem:[%s547] sm:$0xf]
  %550 = vset.pattern.permute.xlu0 0
  %551 = vperm.xlu0 %550, %v548
  %v552 = vpop.permute.xlu0 %551
  %v554 = vmul.f32 %v552, %v439
  %v555 = vmul.f32 %v552, %v440
  %v556 = vadd.f32 %v545, %v554
  %v557 = vadd.f32 %v546, %v555
  %s558 = scalar_lea.vmem %s3, 8
  %v559 = vld [vmem:[%s558] sm:$0xf]
  %561 = vset.pattern.permute.xlu0 0
  %562 = vperm.xlu0 %561, %v559
  %v563 = vpop.permute.xlu0 %562
  %v565 = vmul.f32 %v563, %v460
  %v566 = vmul.f32 %v563, %v461
  %v567 = vadd.f32 %v556, %v565
  %v568 = vadd.f32 %v557, %v566
  %s569 = scalar_lea.vmem %s3, 12
  %v570 = vld [vmem:[%s569] sm:$0xf]
  %572 = vset.pattern.permute.xlu0 0
  %573 = vperm.xlu0 %572, %v570
  %v574 = vpop.permute.xlu0 %573
  %v576 = vmul.f32 %v574, %v472
  %v577 = vmul.f32 %v574, %v473
  %v578 = vadd.f32 %v567, %v576
  %v579 = vadd.f32 %v568, %v577
  %s580 = scalar_lea.vmem %s3, 16
  %v581 = vld [vmem:[%s580] sm:$0xf]
  %583 = vset.pattern.permute.xlu0 0
  %584 = vperm.xlu0 %583, %v581
  %v585 = vpop.permute.xlu0 %584
  %v587 = vmul.f32 %v585, %v493
  %v588 = vmul.f32 %v585, %v494
  %v589 = vadd.f32 %v578, %v587
  %v590 = vadd.f32 %v579, %v588
  %s591 = scalar_lea.vmem %s3, 20
  %v592 = vld [vmem:[%s591] sm:$0xf]
  %594 = vset.pattern.permute.xlu0 0
  %595 = vperm.xlu0 %594, %v592
  %v596 = vpop.permute.xlu0 %595
  %v598 = vmul.f32 %v596, %v514
  %v599 = vmul.f32 %v596, %v515
  %v600 = vadd.f32 %v589, %v598
  %v601 = vadd.f32 %v590, %v599
  %s602 = scalar_lea.vmem %s3, 24
  %v603 = vld [vmem:[%s602] sm:$0xf]
  %605 = vset.pattern.permute.xlu0 0
  %606 = vperm.xlu0 %605, %v603
  %v607 = vpop.permute.xlu0 %606
  %v609 = vmul.f32 %v607, %v535
  %v610 = vmul.f32 %v607, %v536
  %v611 = vadd.f32 %v600, %v609
  %v612 = vadd.f32 %v601, %v610
  %v613 = vadd.s32 %v373, 4294967248
  %v614 = vadd.s32 %v374, 4294967248
  %vm615 = vcmp.ge.s32.totalorder %v613, 0
  %vm616 = vcmp.ge.s32.totalorder %v614, 0
  %vm617 = vcmp.lt.s32.totalorder %v613, 256
  %vm618 = vcmp.lt.s32.totalorder %v614, 256
  %vm619 = vmand %vm615, %vm617
  %vm620 = vmand %vm616, %vm618
  %v621 = vsel %vm619, 1, 0
  %v622 = vsel %vm620, 1, 0
  %v623 = vcvt.s32.f32 %v621
  %v624 = vcvt.s32.f32 %v622
  %625 = vrot.lane.b32.xlu0 %v611, 48
  %v626 = vpop.permute.xlu0 %625
  %627 = vrot.lane.b32.xlu0 %v612, 48
  %v628 = vpop.permute.xlu0 %627
  %vm629 = vcmp.lt.s32.totalorder %v373, 48
  %v630 = vsel %vm629, %v626, %v628
  %v631 = vsel %vm629, %v628, %v626
  %v632 = vmul.f32 %v631, %v623
  %v633 = vmul.f32 %v630, %v624
  %v634 = vadd.f32 %v632, 0.0
  %v635 = vadd.f32 %v633, 0.0
  %s636 = scalar_lea.vmem %s3, 28
  %v637 = vld [vmem:[%s636] sm:$0xf]
  %639 = vset.pattern.permute.xlu0 0
  %640 = vperm.xlu0 %639, %v637
  %v641 = vpop.permute.xlu0 %640
  %v643 = vmul.f32 %v641, %v418
  %v644 = vmul.f32 %v641, %v419
  %v645 = vadd.f32 %v643, 0.0
  %v646 = vadd.f32 %v644, 0.0
  %s647 = scalar_lea.vmem %s3, 32
  %v648 = vld [vmem:[%s647] sm:$0xf]
  %650 = vset.pattern.permute.xlu0 0
  %651 = vperm.xlu0 %650, %v648
  %v652 = vpop.permute.xlu0 %651
  %v654 = vmul.f32 %v652, %v439
  %v655 = vmul.f32 %v652, %v440
  %v656 = vadd.f32 %v645, %v654
  %v657 = vadd.f32 %v646, %v655
  %s658 = scalar_lea.vmem %s3, 36
  %v659 = vld [vmem:[%s658] sm:$0xf]
  %661 = vset.pattern.permute.xlu0 0
  %662 = vperm.xlu0 %661, %v659
  %v663 = vpop.permute.xlu0 %662
  %v665 = vmul.f32 %v663, %v460
  %v666 = vmul.f32 %v663, %v461
  %v667 = vadd.f32 %v656, %v665
  %v668 = vadd.f32 %v657, %v666
  %s669 = scalar_lea.vmem %s3, 40
  %v670 = vld [vmem:[%s669] sm:$0xf]
  %672 = vset.pattern.permute.xlu0 0
  %673 = vperm.xlu0 %672, %v670
  %v674 = vpop.permute.xlu0 %673
  %v676 = vmul.f32 %v674, %v472
  %v677 = vmul.f32 %v674, %v473
  %v678 = vadd.f32 %v667, %v676
  %v679 = vadd.f32 %v668, %v677
  %s680 = scalar_lea.vmem %s3, 44
  %v681 = vld [vmem:[%s680] sm:$0xf]
  %683 = vset.pattern.permute.xlu0 0
  %684 = vperm.xlu0 %683, %v681
  %v685 = vpop.permute.xlu0 %684
  %v687 = vmul.f32 %v685, %v493
  %v688 = vmul.f32 %v685, %v494
  %v689 = vadd.f32 %v678, %v687
  %v690 = vadd.f32 %v679, %v688
  %s691 = scalar_lea.vmem %s3, 48
  %v692 = vld [vmem:[%s691] sm:$0xf]
  %694 = vset.pattern.permute.xlu0 0
  %695 = vperm.xlu0 %694, %v692
  %v696 = vpop.permute.xlu0 %695
  %v698 = vmul.f32 %v696, %v514
  %v699 = vmul.f32 %v696, %v515
  %v700 = vadd.f32 %v689, %v698
  %v701 = vadd.f32 %v690, %v699
  %s702 = scalar_lea.vmem %s3, 52
  %v703 = vld [vmem:[%s702] sm:$0xf]
  %705 = vset.pattern.permute.xlu0 0
  %706 = vperm.xlu0 %705, %v703
  %v707 = vpop.permute.xlu0 %706
  %v709 = vmul.f32 %v707, %v535
  %v710 = vmul.f32 %v707, %v536
  %v711 = vadd.f32 %v700, %v709
  %v712 = vadd.f32 %v701, %v710
  %v713 = vadd.s32 %v373, 4294967264
  %v714 = vadd.s32 %v374, 4294967264
  %vm715 = vcmp.ge.s32.totalorder %v713, 0
  %vm716 = vcmp.ge.s32.totalorder %v714, 0
  %vm717 = vcmp.lt.s32.totalorder %v713, 256
  %vm718 = vcmp.lt.s32.totalorder %v714, 256
  %vm719 = vmand %vm715, %vm717
  %vm720 = vmand %vm716, %vm718
  %v721 = vsel %vm719, 1, 0
  %v722 = vsel %vm720, 1, 0
  %v723 = vcvt.s32.f32 %v721
  %v724 = vcvt.s32.f32 %v722
  %725 = vrot.lane.b32.xlu0 %v711, 32
  %v726 = vpop.permute.xlu0 %725
  %727 = vrot.lane.b32.xlu0 %v712, 32
  %v728 = vpop.permute.xlu0 %727
  %vm729 = vcmp.lt.s32.totalorder %v373, 32
  %v730 = vsel %vm729, %v726, %v728
  %v731 = vsel %vm729, %v728, %v726
  %v732 = vmul.f32 %v731, %v723
  %v733 = vmul.f32 %v730, %v724
  %v734 = vadd.f32 %v732, 0.0
  %v735 = vadd.f32 %v733, 0.0
  %s736 = scalar_lea.vmem %s3, 56
  %v737 = vld [vmem:[%s736] sm:$0xf]
  %739 = vset.pattern.permute.xlu0 0
  %740 = vperm.xlu0 %739, %v737
  %v741 = vpop.permute.xlu0 %740
  %v743 = vmul.f32 %v741, %v418
  %v744 = vmul.f32 %v741, %v419
  %v745 = vadd.f32 %v743, 0.0
  %v746 = vadd.f32 %v744, 0.0
  %s747 = scalar_lea.vmem %s3, 60
  %v748 = vld [vmem:[%s747] sm:$0xf]
  %750 = vset.pattern.permute.xlu0 0
  %751 = vperm.xlu0 %750, %v748
  %v752 = vpop.permute.xlu0 %751
  %v754 = vmul.f32 %v752, %v439
  %v755 = vmul.f32 %v752, %v440
  %v756 = vadd.f32 %v745, %v754
  %v757 = vadd.f32 %v746, %v755
  %s758 = scalar_lea.vmem %s3, 64
  %v759 = vld [vmem:[%s758] sm:$0xf]
  %761 = vset.pattern.permute.xlu0 0
  %762 = vperm.xlu0 %761, %v759
  %v763 = vpop.permute.xlu0 %762
  %v765 = vmul.f32 %v763, %v460
  %v766 = vmul.f32 %v763, %v461
  %v767 = vadd.f32 %v756, %v765
  %v768 = vadd.f32 %v757, %v766
  %s769 = scalar_lea.vmem %s3, 68
  %v770 = vld [vmem:[%s769] sm:$0xf]
  %772 = vset.pattern.permute.xlu0 0
  %773 = vperm.xlu0 %772, %v770
  %v774 = vpop.permute.xlu0 %773
  %v776 = vmul.f32 %v774, %v472
  %v777 = vmul.f32 %v774, %v473
  %v778 = vadd.f32 %v767, %v776
  %v779 = vadd.f32 %v768, %v777
  %s780 = scalar_lea.vmem %s3, 72
  %v781 = vld [vmem:[%s780] sm:$0xf]
  %783 = vset.pattern.permute.xlu0 0
  %784 = vperm.xlu0 %783, %v781
  %v785 = vpop.permute.xlu0 %784
  %v787 = vmul.f32 %v785, %v493
  %v788 = vmul.f32 %v785, %v494
  %v789 = vadd.f32 %v778, %v787
  %v790 = vadd.f32 %v779, %v788
  %s791 = scalar_lea.vmem %s3, 76
  %v792 = vld [vmem:[%s791] sm:$0xf]
  %794 = vset.pattern.permute.xlu0 0
  %795 = vperm.xlu0 %794, %v792
  %v796 = vpop.permute.xlu0 %795
  %v798 = vmul.f32 %v796, %v514
  %v799 = vmul.f32 %v796, %v515
  %v800 = vadd.f32 %v789, %v798
  %v801 = vadd.f32 %v790, %v799
  %s802 = scalar_lea.vmem %s3, 80
  %v803 = vld [vmem:[%s802] sm:$0xf]
  %805 = vset.pattern.permute.xlu0 0
  %806 = vperm.xlu0 %805, %v803
  %v807 = vpop.permute.xlu0 %806
  %v809 = vmul.f32 %v807, %v535
  %v810 = vmul.f32 %v807, %v536
  %v811 = vadd.f32 %v800, %v809
  %v812 = vadd.f32 %v801, %v810
  %v813 = vadd.s32 %v373, 4294967280
  %v814 = vadd.s32 %v374, 4294967280
  %vm815 = vcmp.ge.s32.totalorder %v813, 0
  %vm816 = vcmp.ge.s32.totalorder %v814, 0
  %vm817 = vcmp.lt.s32.totalorder %v813, 256
  %vm818 = vcmp.lt.s32.totalorder %v814, 256
  %vm819 = vmand %vm815, %vm817
  %vm820 = vmand %vm816, %vm818
  %v821 = vsel %vm819, 1, 0
  %v822 = vsel %vm820, 1, 0
  %v823 = vcvt.s32.f32 %v821
  %v824 = vcvt.s32.f32 %v822
  %825 = vrot.lane.b32.xlu0 %v811, 16
  %v826 = vpop.permute.xlu0 %825
  %827 = vrot.lane.b32.xlu0 %v812, 16
  %v828 = vpop.permute.xlu0 %827
  %vm829 = vcmp.lt.s32.totalorder %v373, 16
  %v830 = vsel %vm829, %v826, %v828
  %v831 = vsel %vm829, %v828, %v826
  %v832 = vmul.f32 %v831, %v823
  %v833 = vmul.f32 %v830, %v824
  %v834 = vadd.f32 %v634, %v832
  %v835 = vadd.f32 %v635, %v833
  %s836 = scalar_lea.vmem %s3, 84
  %v837 = vld [vmem:[%s836] sm:$0xf]
  %839 = vset.pattern.permute.xlu0 0
  %840 = vperm.xlu0 %839, %v837
  %v841 = vpop.permute.xlu0 %840
  %v843 = vmul.f32 %v841, %v418
  %v844 = vmul.f32 %v841, %v419
  %v845 = vadd.f32 %v843, 0.0
  %v846 = vadd.f32 %v844, 0.0
  %s847 = scalar_lea.vmem %s3, 88
  %v848 = vld [vmem:[%s847] sm:$0xf]
  %850 = vset.pattern.permute.xlu0 0
  %851 = vperm.xlu0 %850, %v848
  %v852 = vpop.permute.xlu0 %851
  %v854 = vmul.f32 %v852, %v439
  %v855 = vmul.f32 %v852, %v440
  %v856 = vadd.f32 %v845, %v854
  %v857 = vadd.f32 %v846, %v855
  %s858 = scalar_lea.vmem %s3, 92
  %v859 = vld [vmem:[%s858] sm:$0xf]
  %861 = vset.pattern.permute.xlu0 0
  %862 = vperm.xlu0 %861, %v859
  %v863 = vpop.permute.xlu0 %862
  %v865 = vmul.f32 %v863, %v460
  %v866 = vmul.f32 %v863, %v461
  %v867 = vadd.f32 %v856, %v865
  %v868 = vadd.f32 %v857, %v866
  %s869 = scalar_lea.vmem %s3, 96
  %v870 = vld [vmem:[%s869] sm:$0xf]
  %872 = vset.pattern.permute.xlu0 0
  %873 = vperm.xlu0 %872, %v870
  %v874 = vpop.permute.xlu0 %873
  %v876 = vmul.f32 %v874, %v472
  %v877 = vmul.f32 %v874, %v473
  %v878 = vadd.f32 %v867, %v876
  %v879 = vadd.f32 %v868, %v877
  %s880 = scalar_lea.vmem %s3, 100
  %v881 = vld [vmem:[%s880] sm:$0xf]
  %883 = vset.pattern.permute.xlu0 0
  %884 = vperm.xlu0 %883, %v881
  %v885 = vpop.permute.xlu0 %884
  %v887 = vmul.f32 %v885, %v493
  %v888 = vmul.f32 %v885, %v494
  %v889 = vadd.f32 %v878, %v887
  %v890 = vadd.f32 %v879, %v888
  %s891 = scalar_lea.vmem %s3, 104
  %v892 = vld [vmem:[%s891] sm:$0xf]
  %894 = vset.pattern.permute.xlu0 0
  %895 = vperm.xlu0 %894, %v892
  %v896 = vpop.permute.xlu0 %895
  %v898 = vmul.f32 %v896, %v514
  %v899 = vmul.f32 %v896, %v515
  %v900 = vadd.f32 %v889, %v898
  %v901 = vadd.f32 %v890, %v899
  %s902 = scalar_lea.vmem %s3, 108
  %v903 = vld [vmem:[%s902] sm:$0xf]
  %905 = vset.pattern.permute.xlu0 0
  %906 = vperm.xlu0 %905, %v903
  %v907 = vpop.permute.xlu0 %906
  %v909 = vmul.f32 %v907, %v535
  %v910 = vmul.f32 %v907, %v536
  %v911 = vadd.f32 %v900, %v909
  %v912 = vadd.f32 %v901, %v910
  %vm913 = vcmp.ge.s32.totalorder %v373, 0
  %vm914 = vcmp.ge.s32.totalorder %v374, 0
  %vm915 = vcmp.lt.s32.totalorder %v373, 256
  %vm916 = vcmp.lt.s32.totalorder %v374, 256
  %vm917 = vmand %vm913, %vm915
  %vm918 = vmand %vm914, %vm916
  %v919 = vsel %vm917, 1, 0
  %v920 = vsel %vm918, 1, 0
  %v921 = vcvt.s32.f32 %v919
  %v922 = vcvt.s32.f32 %v920
  %v923 = vmul.f32 %v911, %v921
  %v924 = vmul.f32 %v912, %v922
  %v925 = vadd.f32 %v734, %v923
  %v926 = vadd.f32 %v735, %v924
  %s927 = scalar_lea.vmem %s3, 112
  %v928 = vld [vmem:[%s927] sm:$0xf]
  %930 = vset.pattern.permute.xlu0 0
  %931 = vperm.xlu0 %930, %v928
  %v932 = vpop.permute.xlu0 %931
  %v934 = vmul.f32 %v932, %v418
  %v935 = vmul.f32 %v932, %v419
  %v936 = vadd.f32 %v934, 0.0
  %v937 = vadd.f32 %v935, 0.0
  %s938 = scalar_lea.vmem %s3, 116
  %v939 = vld [vmem:[%s938] sm:$0xf]
  %941 = vset.pattern.permute.xlu0 0
  %942 = vperm.xlu0 %941, %v939
  %v943 = vpop.permute.xlu0 %942
  %v945 = vmul.f32 %v943, %v439
  %v946 = vmul.f32 %v943, %v440
  %v947 = vadd.f32 %v936, %v945
  %v948 = vadd.f32 %v937, %v946
  %s949 = scalar_lea.vmem %s3, 120
  %v950 = vld [vmem:[%s949] sm:$0xf]
  %952 = vset.pattern.permute.xlu0 0
  %953 = vperm.xlu0 %952, %v950
  %v954 = vpop.permute.xlu0 %953
  %v956 = vmul.f32 %v954, %v460
  %v957 = vmul.f32 %v954, %v461
  %v958 = vadd.f32 %v947, %v956
  %v959 = vadd.f32 %v948, %v957
  %s960 = scalar_lea.vmem %s3, 124
  %v961 = vld [vmem:[%s960] sm:$0xf]
  %963 = vset.pattern.permute.xlu0 0
  %964 = vperm.xlu0 %963, %v961
  %v965 = vpop.permute.xlu0 %964
  %v967 = vmul.f32 %v965, %v472
  %v968 = vmul.f32 %v965, %v473
  %v969 = vadd.f32 %v958, %v967
  %v970 = vadd.f32 %v959, %v968
  %s971 = scalar_lea.vmem %s3, 128
  %v972 = vld [vmem:[%s971] sm:$0xf]
  %974 = vset.pattern.permute.xlu0 0
  %975 = vperm.xlu0 %974, %v972
  %v976 = vpop.permute.xlu0 %975
  %v978 = vmul.f32 %v976, %v493
  %v979 = vmul.f32 %v976, %v494
  %v980 = vadd.f32 %v969, %v978
  %v981 = vadd.f32 %v970, %v979
  %s982 = scalar_lea.vmem %s3, 132
  %v983 = vld [vmem:[%s982] sm:$0xf]
  %985 = vset.pattern.permute.xlu0 0
  %986 = vperm.xlu0 %985, %v983
  %v987 = vpop.permute.xlu0 %986
  %v989 = vmul.f32 %v987, %v514
  %v990 = vmul.f32 %v987, %v515
  %v991 = vadd.f32 %v980, %v989
  %v992 = vadd.f32 %v981, %v990
  %s993 = scalar_lea.vmem %s3, 136
  %v994 = vld [vmem:[%s993] sm:$0xf]
  %996 = vset.pattern.permute.xlu0 0
  %997 = vperm.xlu0 %996, %v994
  %v998 = vpop.permute.xlu0 %997
  %v1000 = vmul.f32 %v998, %v535
  %v1001 = vmul.f32 %v998, %v536
  %v1002 = vadd.f32 %v991, %v1000
  %v1003 = vadd.f32 %v992, %v1001
  %v1004 = vadd.s32 %v373, 16
  %v1005 = vadd.s32 %v374, 16
  %vm1006 = vcmp.ge.s32.totalorder %v1004, 0
  %vm1007 = vcmp.ge.s32.totalorder %v1005, 0
  %vm1008 = vcmp.lt.s32.totalorder %v1004, 256
  %vm1009 = vcmp.lt.s32.totalorder %v1005, 256
  %vm1010 = vmand %vm1006, %vm1008
  %vm1011 = vmand %vm1007, %vm1009
  %v1012 = vsel %vm1010, 1, 0
  %v1013 = vsel %vm1011, 1, 0
  %v1014 = vcvt.s32.f32 %v1012
  %v1015 = vcvt.s32.f32 %v1013
  %1016 = vrot.lane.b32.xlu0 %v1002, 112
  %v1017 = vpop.permute.xlu0 %1016
  %1018 = vrot.lane.b32.xlu0 %v1003, 112
  %v1019 = vpop.permute.xlu0 %1018
  %vm1020 = vcmp.lt.s32.totalorder %v373, 112
  %v1021 = vsel %vm1020, %v1017, %v1019
  %v1022 = vsel %vm1020, %v1019, %v1017
  %v1023 = vmul.f32 %v1021, %v1014
  %v1024 = vmul.f32 %v1022, %v1015
  %v1025 = vadd.f32 %v834, %v1023
  %v1026 = vadd.f32 %v835, %v1024
  %s1027 = scalar_lea.vmem %s3, 140
  %v1028 = vld [vmem:[%s1027] sm:$0xf]
  %1030 = vset.pattern.permute.xlu0 0
  %1031 = vperm.xlu0 %1030, %v1028
  %v1032 = vpop.permute.xlu0 %1031
  %v1034 = vmul.f32 %v1032, %v418
  %v1035 = vmul.f32 %v1032, %v419
  %v1036 = vadd.f32 %v1034, 0.0
  %v1037 = vadd.f32 %v1035, 0.0
  %s1038 = scalar_lea.vmem %s3, 144
  %v1039 = vld [vmem:[%s1038] sm:$0xf]
  %1041 = vset.pattern.permute.xlu0 0
  %1042 = vperm.xlu0 %1041, %v1039
  %v1043 = vpop.permute.xlu0 %1042
  %v1045 = vmul.f32 %v1043, %v439
  %v1046 = vmul.f32 %v1043, %v440
  %v1047 = vadd.f32 %v1036, %v1045
  %v1048 = vadd.f32 %v1037, %v1046
  %s1049 = scalar_lea.vmem %s3, 148
  %v1050 = vld [vmem:[%s1049] sm:$0xf]
  %1052 = vset.pattern.permute.xlu0 0
  %1053 = vperm.xlu0 %1052, %v1050
  %v1054 = vpop.permute.xlu0 %1053
  %v1056 = vmul.f32 %v1054, %v460
  %v1057 = vmul.f32 %v1054, %v461
  %v1058 = vadd.f32 %v1047, %v1056
  %v1059 = vadd.f32 %v1048, %v1057
  %s1060 = scalar_lea.vmem %s3, 152
  %v1061 = vld [vmem:[%s1060] sm:$0xf]
  %1063 = vset.pattern.permute.xlu0 0
  %1064 = vperm.xlu0 %1063, %v1061
  %v1065 = vpop.permute.xlu0 %1064
  %v1067 = vmul.f32 %v1065, %v472
  %v1068 = vmul.f32 %v1065, %v473
  %v1069 = vadd.f32 %v1058, %v1067
  %v1070 = vadd.f32 %v1059, %v1068
  %s1071 = scalar_lea.vmem %s3, 156
  %v1072 = vld [vmem:[%s1071] sm:$0xf]
  %1074 = vset.pattern.permute.xlu0 0
  %1075 = vperm.xlu0 %1074, %v1072
  %v1076 = vpop.permute.xlu0 %1075
  %v1078 = vmul.f32 %v1076, %v493
  %v1079 = vmul.f32 %v1076, %v494
  %v1080 = vadd.f32 %v1069, %v1078
  %v1081 = vadd.f32 %v1070, %v1079
  %s1082 = scalar_lea.vmem %s3, 160
  %v1083 = vld [vmem:[%s1082] sm:$0xf]
  %1085 = vset.pattern.permute.xlu0 0
  %1086 = vperm.xlu0 %1085, %v1083
  %v1087 = vpop.permute.xlu0 %1086
  %v1089 = vmul.f32 %v1087, %v514
  %v1090 = vmul.f32 %v1087, %v515
  %v1091 = vadd.f32 %v1080, %v1089
  %v1092 = vadd.f32 %v1081, %v1090
  %s1093 = scalar_lea.vmem %s3, 164
  %v1094 = vld [vmem:[%s1093] sm:$0xf]
  %1096 = vset.pattern.permute.xlu0 0
  %1097 = vperm.xlu0 %1096, %v1094
  %v1098 = vpop.permute.xlu0 %1097
  %v1100 = vmul.f32 %v1098, %v535
  %v1101 = vmul.f32 %v1098, %v536
  %v1102 = vadd.f32 %v1091, %v1100
  %v1103 = vadd.f32 %v1092, %v1101
  %v1104 = vadd.s32 %v373, 32
  %v1105 = vadd.s32 %v374, 32
  %vm1106 = vcmp.ge.s32.totalorder %v1104, 0
  %vm1107 = vcmp.ge.s32.totalorder %v1105, 0
  %vm1108 = vcmp.lt.s32.totalorder %v1104, 256
  %vm1109 = vcmp.lt.s32.totalorder %v1105, 256
  %vm1110 = vmand %vm1106, %vm1108
  %vm1111 = vmand %vm1107, %vm1109
  %v1112 = vsel %vm1110, 1, 0
  %v1113 = vsel %vm1111, 1, 0
  %v1114 = vcvt.s32.f32 %v1112
  %v1115 = vcvt.s32.f32 %v1113
  %1116 = vrot.lane.b32.xlu0 %v1102, 96
  %v1117 = vpop.permute.xlu0 %1116
  %1118 = vrot.lane.b32.xlu0 %v1103, 96
  %v1119 = vpop.permute.xlu0 %1118
  %vm1120 = vcmp.lt.s32.totalorder %v373, 96
  %v1121 = vsel %vm1120, %v1117, %v1119
  %v1122 = vsel %vm1120, %v1119, %v1117
  %v1123 = vmul.f32 %v1121, %v1114
  %v1124 = vmul.f32 %v1122, %v1115
  %v1125 = vadd.f32 %v925, %v1123
  %v1126 = vadd.f32 %v926, %v1124
  %s1127 = scalar_lea.vmem %s3, 168
  %v1128 = vld [vmem:[%s1127] sm:$0xf]
  %1130 = vset.pattern.permute.xlu0 0
  %1131 = vperm.xlu0 %1130, %v1128
  %v1132 = vpop.permute.xlu0 %1131
  %v1134 = vmul.f32 %v1132, %v418
  %v1135 = vmul.f32 %v1132, %v419
  %v1136 = vadd.f32 %v1134, 0.0
  %v1137 = vadd.f32 %v1135, 0.0
  %s1138 = scalar_lea.vmem %s3, 172
  %v1139 = vld [vmem:[%s1138] sm:$0xf]
  %1141 = vset.pattern.permute.xlu0 0
  %1142 = vperm.xlu0 %1141, %v1139
  %v1143 = vpop.permute.xlu0 %1142
  %v1145 = vmul.f32 %v1143, %v439
  %v1146 = vmul.f32 %v1143, %v440
  %v1147 = vadd.f32 %v1136, %v1145
  %v1148 = vadd.f32 %v1137, %v1146
  %s1149 = scalar_lea.vmem %s3, 176
  %v1150 = vld [vmem:[%s1149] sm:$0xf]
  %1152 = vset.pattern.permute.xlu0 0
  %1153 = vperm.xlu0 %1152, %v1150
  %v1154 = vpop.permute.xlu0 %1153
  %v1156 = vmul.f32 %v1154, %v460
  %v1157 = vmul.f32 %v1154, %v461
  %v1158 = vadd.f32 %v1147, %v1156
  %v1159 = vadd.f32 %v1148, %v1157
  %s1160 = scalar_lea.vmem %s3, 180
  %v1161 = vld [vmem:[%s1160] sm:$0xf]
  %1163 = vset.pattern.permute.xlu0 0
  %1164 = vperm.xlu0 %1163, %v1161
  %v1165 = vpop.permute.xlu0 %1164
  %v1167 = vmul.f32 %v1165, %v472
  %v1168 = vmul.f32 %v1165, %v473
  %v1169 = vadd.f32 %v1158, %v1167
  %v1170 = vadd.f32 %v1159, %v1168
  %s1171 = scalar_lea.vmem %s3, 184
  %v1172 = vld [vmem:[%s1171] sm:$0xf]
  %1174 = vset.pattern.permute.xlu0 0
  %1175 = vperm.xlu0 %1174, %v1172
  %v1176 = vpop.permute.xlu0 %1175
  %v1178 = vmul.f32 %v1176, %v493
  %v1179 = vmul.f32 %v1176, %v494
  %v1180 = vadd.f32 %v1169, %v1178
  %v1181 = vadd.f32 %v1170, %v1179
  %s1182 = scalar_lea.vmem %s3, 188
  %v1183 = vld [vmem:[%s1182] sm:$0xf]
  %1185 = vset.pattern.permute.xlu0 0
  %1186 = vperm.xlu0 %1185, %v1183
  %v1187 = vpop.permute.xlu0 %1186
  %v1189 = vmul.f32 %v1187, %v514
  %v1190 = vmul.f32 %v1187, %v515
  %v1191 = vadd.f32 %v1180, %v1189
  %v1192 = vadd.f32 %v1181, %v1190
  %s1193 = scalar_lea.vmem %s3, 192
  %v1194 = vld [vmem:[%s1193] sm:$0xf]
  %1196 = vset.pattern.permute.xlu0 0
  %1197 = vperm.xlu0 %1196, %v1194
  %v1198 = vpop.permute.xlu0 %1197
  %v1200 = vmul.f32 %v1198, %v535
  %v1201 = vmul.f32 %v1198, %v536
  %v1202 = vadd.f32 %v1191, %v1200
  %v1203 = vadd.f32 %v1192, %v1201
  %v1204 = vadd.s32 %v373, 48
  %v1205 = vadd.s32 %v374, 48
  %vm1206 = vcmp.ge.s32.totalorder %v1204, 0
  %vm1207 = vcmp.ge.s32.totalorder %v1205, 0
  %vm1208 = vcmp.lt.s32.totalorder %v1204, 256
  %vm1209 = vcmp.lt.s32.totalorder %v1205, 256
  %vm1210 = vmand %vm1206, %vm1208
  %vm1211 = vmand %vm1207, %vm1209
  %v1212 = vsel %vm1210, 1, 0
  %v1213 = vsel %vm1211, 1, 0
  %v1214 = vcvt.s32.f32 %v1212
  %v1215 = vcvt.s32.f32 %v1213
  %1216 = vrot.lane.b32.xlu0 %v1202, 80
  %v1217 = vpop.permute.xlu0 %1216
  %1218 = vrot.lane.b32.xlu0 %v1203, 80
  %v1219 = vpop.permute.xlu0 %1218
  %vm1220 = vcmp.lt.s32.totalorder %v373, 80
  %v1221 = vsel %vm1220, %v1217, %v1219
  %v1222 = vsel %vm1220, %v1219, %v1217
  %v1223 = vmul.f32 %v1221, %v1214
  %v1224 = vmul.f32 %v1222, %v1215
  %v1225 = vadd.f32 %v1025, %v1223
  %v1226 = vadd.f32 %v1026, %v1224
  %v1227 = vadd.f32 %v1225, %v1125
  %v1228 = vadd.f32 %v1226, %v1126
  %v1231 = vrot.slane %v1227, 2
  %v1232 = vrot.slane %v1228, 2
  %v1235 = vadd.f32 %v1227, %v1231
  %v1236 = vadd.f32 %v1228, %v1232
  %v1237 = vsub.f32 0.0, %v1235
  %v1238 = vsub.f32 0.0, %v1236
  %v1239 = vmul.f32 %v1237, 1.442695
  %v1240 = vpow.pop %v1239
  %v1241 = vmul.f32 %v1238, 1.442695
  %v1242 = vpow.pop %v1241
  %v1243 = vadd.f32 %v1240, 1.0
  %v1244 = vadd.f32 %v1242, 1.0
  %v1245 = vrcp.pop %v1243
  %v1246 = vmul.f32 1.0, %v1245
  %v1247 = vrcp.pop %v1244
  %v1248 = vmul.f32 1.0, %v1247
  %v1249 = vlaneseq
  %v1250 = vshrl.u32 %v1249, 7
  %v1251 = vsub.s32 0, %v1250
  %v1252 = vrot.slane %v1246, %v1251
  %v1253 = vlaneseq
  %v1254 = vshrl.u32 %v1253, 7
  %v1255 = vsub.s32 0, %v1254
  %v1256 = vrot.slane %v1248, %v1255
  %v1257 = vmul.f32 %v295, %v1252
  %v1258 = vmul.f32 %v296, %v1256
  %v1259 = vmul.f32 %v297, %v1252
  %v1260 = vmul.f32 %v298, %v1256
  %1261 = vst [vmem:[%s4] sm:$0xff] %v1257
  %1262 = vst [vmem:[%s4 + $0x8] sm:$0xff] %v1258
  %1263 = vst [vmem:[%s4 + $0x10] sm:$0xff] %v1259
  %1264 = vst [vmem:[%s4 + $0x18] sm:$0xff] %v1260
  %v1265 = vlaneseq
  %v1266 = vshrl.u32 %v1265, 7
  %v1267 = vsub.s32 1, %v1266
  %v1268 = vrot.slane %v1246, %v1267
  %v1269 = vlaneseq
  %v1270 = vshrl.u32 %v1269, 7
  %v1271 = vsub.s32 1, %v1270
  %v1272 = vrot.slane %v1248, %v1271
  %v1273 = vmul.f32 %v299, %v1268
  %v1274 = vmul.f32 %v300, %v1272
  %v1275 = vmul.f32 %v301, %v1268
  %v1276 = vmul.f32 %v302, %v1272
  %1277 = vst [vmem:[%s4 + $0x20] sm:$0xff] %v1273
  %1278 = vst [vmem:[%s4 + $0x28] sm:$0xff] %v1274
  %1279 = vst [vmem:[%s4 + $0x30] sm:$0xff] %v1275
  %1280 = vst [vmem:[%s4 + $0x38] sm:$0xff] %v1276
  // Predicated region
  $region18: #{cbam_pallas.1} parent=0 // pred_check
    _
  $region19: #{cbam_pallas.1} parent=0 // pred_check_branch
    %1282 = sbr.rel (0) target = $region21
  $region20: #{cbam_pallas.1} parent=0 // pred_region
    _
  $region21: #{cbam_pallas.1} parent=0 // pred_fallthru
    _
  // Predicated region
  $region22: #{cbam_pallas.1} parent=0 // pred_check
    _
  $region23: #{cbam_pallas.1} parent=0 // pred_check_branch
    %1284 = sbr.rel (0) target = $region25
  $region24: #{cbam_pallas.1} parent=0 // pred_region
    _
  $region25: #{cbam_pallas.1} parent=0 // pred_fallthru
    _

</llo_original>
